<compile_context>
chip_gen: v7x
topology: tpu7x:2x2x1
jax: 0.10.0
libtpu: 0.0.40
codegen_flags: <defaults>
</compile_context>

<pallas_src>
import functools
import math

import jax
import jax.numpy as jnp
from jax import lax
from jax.experimental import pallas as pl
from jax.experimental.pallas import tpu as pltpu  # noqa: F401


# ---------------------------------------------------------------------------
# Kernel
# ---------------------------------------------------------------------------
def sparse_mha_decoder_kernel(q_ref, k_ref, v_ref, wq_ref, wk_ref, wv_ref,
                              wo_ref, mask_ref, bias_ref, o_ref, *,
                              head_num, dim_QK, dim_V, width, stride):
    """Fused forward, single program.

    Shapes (N = batch * length_kv):
      q_ref    : (stride*N, dim_q)       phase-major, row-flattened queries
      k_ref    : (N, dim_k)
      v_ref    : (N, dim_v)
      wq_ref   : (dim_q, H*dim_QK)
      wk_ref   : (dim_k, H*dim_QK)
      wv_ref   : (dim_v, H*dim_V)
      wo_ref   : (H*dim_V, dim_out_padded)
      mask_ref : (stride*width, N, 1)    additive 0 / -inf mask
      bias_ref : (width, N, 1)           conv bias pre-broadcast over rows
      o_ref    : (stride*N, dim_out_padded)
    """
    f32 = jnp.float32
    n = k_ref.shape[0]                                                 # N

    # Projections: three MXU matmuls, each once per call.
    K = jnp.dot(k_ref[...], wk_ref[...], preferred_element_type=f32)   # (N, H*dQK)
    V = jnp.dot(v_ref[...], wv_ref[...], preferred_element_type=f32)   # (N, H*dV)
    Qall = jnp.dot(q_ref[...], wq_ref[...], preferred_element_type=f32)  # (stride*N, H*dQK)

    # Window slot c reads kv row (i - (width-1-c)): a static flat row shift.
    # Cross-batch leakage only hits slots the -inf mask kills exactly.
    K_sh, V_sh = [], []
    for c in range(width):
        s = width - 1 - c
        if s == 0:
            K_sh.append(K)
            V_sh.append(V)
        else:
            K_sh.append(jnp.concatenate(
                [jnp.zeros((s, K.shape[1]), f32), K[:n - s, :]], axis=0))
            V_sh.append(jnp.concatenate(
                [jnp.zeros((s, V.shape[1]), f32), V[:n - s, :]], axis=0))

    # Hoisted per-head / per-slot views (reused by every phase iteration).
    K_hc = [[K_sh[c][:, h * dim_QK:(h + 1) * dim_QK] for c in range(width)]
            for h in range(head_num)]
    V_hc = [[V_sh[c][:, h * dim_V:(h + 1) * dim_V] for c in range(width)]
            for h in range(head_num)]
    bias = [bias_ref[c] for c in range(width)]          # each (N, 1)

    phase_outs = []
    for r in range(stride):                             # unrolled phase loop
        Q = Qall[r * n:(r + 1) * n, :]                  # (N, H*dQK), sublane-aligned slice
        head_outs = []
        for h in range(head_num):
            Qh = Q[:, h * dim_QK:(h + 1) * dim_QK]               # (N, dQK)
            q_sum = jnp.sum(Qh, axis=-1, keepdims=True)          # (N, 1)
            # Window logits:  Q.K  +  bias[c]*sum(Q)  +  mask
            logits = [
                jnp.sum(Qh * K_hc[h][c], axis=-1, keepdims=True)
                + bias[c] * q_sum + mask_ref[r * width + c]
                for c in range(width)
            ]
            m = logits[0]
            for c in range(1, width):
                m = jnp.maximum(m, logits[c])
            exps = [jnp.exp(x - m) for x in logits]
            den = exps[0]
            for c in range(1, width):
                den = den + exps[c]
            inv = pl.reciprocal(den, approx=True)                # (N, 1), EUP
            w0 = exps[0] * inv
            acc = w0 * V_hc[h][0]                                # (N, dV)
            wbias = w0 * bias[0]                                 # (N, 1)
            for c in range(1, width):
                wc = exps[c] * inv
                acc = acc + wc * V_hc[h][c]
                wbias = wbias + wc * bias[c]
            head_outs.append(acc + wbias)
        phase_outs.append(jnp.concatenate(head_outs, axis=-1))   # (N, H*dV)

    heads_all = jnp.concatenate(phase_outs, axis=0)              # (stride*N, H*dV)
    # One MXU matmul + one lane-dense (unmasked) store.
    o_ref[...] = jnp.dot(heads_all, wo_ref[...], preferred_element_type=f32)


# ---------------------------------------------------------------------------
# Wrapper
# ---------------------------------------------------------------------------
def _build_mask(length_q, width, span, stride, length_kv):
    """Exactly the table_QK_mask of the PyTorch constructor (0 / -inf)."""
    rows = jnp.arange(length_q)[:, None]
    cols = jnp.arange(width)[None, :]
    original_col = cols - (width - 1) + rows // stride
    is_valid_col = (original_col >= 0) & (original_col < length_kv)
    is_valid_row = (rows % stride) <= (span - 1 - (width - cols - 1) * stride)
    return jnp.where(is_valid_col & is_valid_row, 0.0, -jnp.inf).astype(jnp.float32)


def sparse_mha_decoder(q, k, v, params, *, head_num, dim_QK, dim_V, span, stride):
    B, Lq, dim_q = q.shape
    _, Lkv, dim_k = k.shape
    dim_v_in = v.shape[-1]
    width = math.ceil(span / stride)
    # TODO(synk): the `length_kv*stride < length_q` truncation branch of the
    # PyTorch source is unreachable/broken (its reshape needs Lq == Lkv*stride),
    # so only that configuration is supported here.
    assert Lq == Lkv * stride, "SparseMHADecoder requires length_q == length_kv * stride"
    n_rows = B * Lkv
    dim_out = params['wo'].shape[1]
    dim_out_p = ((dim_out + 127) // 128) * 128            # lane-dense store

    # Phase-major, row-flattened query layout:
    #   q_flat[r*n_rows + b*Lkv + i, :] = q[b, i*stride + r, :]
    q_flat = (q.reshape(B, Lkv, stride, dim_q)
               .transpose(2, 0, 1, 3)
               .reshape(stride * n_rows, dim_q))
    k2 = k.reshape(n_rows, dim_k)
    v2 = v.reshape(n_rows, dim_v_in)

    # Mask rearranged to [r*width + c, b*Lkv + i, 1].
    mask = _build_mask(Lq, width, span, stride, Lkv)                      # (Lq, width)
    m = mask.reshape(Lkv, stride, width).transpose(1, 2, 0)               # (stride, width, Lkv)
    m = m.reshape(stride * width, Lkv)
    mask_ph = jnp.broadcast_to(m[:, None, :], (stride * width, B, Lkv))
    mask_ph = mask_ph.reshape(stride * width, n_rows)[:, :, None]

    # Conv bias pre-broadcast so the kernel does only elementwise math with it.
    bias_bc = jnp.broadcast_to(
        params['conv_bias'].astype(jnp.float32)[:, None, None], (width, n_rows, 1))

    # Zero-pad the output projection to a multiple of 128 output lanes.
    wo = params['wo'].astype(jnp.float32)
    wo_p = jnp.zeros((wo.shape[0], dim_out_p), jnp.float32).at[:, :dim_out].set(wo)

    kern = functools.partial(sparse_mha_decoder_kernel, head_num=head_num,
                             dim_QK=dim_QK, dim_V=dim_V, width=width, stride=stride)
    out_flat = pl.pallas_call(
        kern,
        out_shape=jax.ShapeDtypeStruct((stride * n_rows, dim_out_p), jnp.float32),
        # No grid / no BlockSpecs: single program; every operand is a
        # whole-array VMEM block (everything fits VMEM comfortably here).
    )(q_flat, k2, v2, params['wq'], params['wk'], params['wv'], wo_p, mask_ph, bias_bc)

    out = out_flat[:, :dim_out]                                   # drop lane padding
    out = (out.reshape(stride, B, Lkv, dim_out)
              .transpose(1, 2, 0, 3)
              .reshape(B, Lq, dim_out))
    return out


# ---------------------------------------------------------------------------
# Pure-JAX reference (mirrors the PyTorch forward) and parameter init
# ---------------------------------------------------------------------------
def reference_forward(q, k, v, params, *, head_num, dim_QK, dim_V, span, stride):
    B, Lq, _ = q.shape
    _, Lkv, _ = k.shape
    width = math.ceil(span / stride)
    hi = lax.Precision.HIGHEST
    Q = jnp.einsum('bld,df->blf', q, params['wq'], precision=hi)
    K = jnp.einsum('bld,df->blf', k, params['wk'], precision=hi)
    V = jnp.einsum('bld,df->blf', v, params['wv'], precision=hi)
    bias = params['conv_bias']

    t = jnp.arange(Lq)[:, None]
    c = jnp.arange(width)[None, :]
    idx = t // stride + c - (width - 1)                       # (Lq, width)
    valid_col = (idx >= 0) & (idx < Lkv)
    valid_row = (t % stride) <= (span - 1 - (width - c - 1) * stride)
    mask = jnp.where(valid_col & valid_row, 0.0, -jnp.inf)
    idx_c = jnp.clip(idx, 0, Lkv - 1)

    gK = jnp.where(valid_col[None, :, :, None], K[:, idx_c, :], 0.0) + bias[None, None, :, None]
    gV = jnp.where(valid_col[None, :, :, None], V[:, idx_c, :], 0.0) + bias[None, None, :, None]

    Qh = Q.reshape(B, Lq, head_num, dim_QK)
    Kh = gK.reshape(B, Lq, width, head_num, dim_QK)
    Vh = gV.reshape(B, Lq, width, head_num, dim_V)
    logits = jnp.einsum('blhd,blchd->blhc', Qh, Kh, precision=hi) + mask[None, :, None, :]
    w = jax.nn.softmax(logits, axis=-1)
    outh = jnp.einsum('blhc,blchd->blhd', w, Vh, precision=hi)
    out = outh.reshape(B, Lq, head_num * dim_V)
    return jnp.einsum('blf,fo->blo', out, params['wo'], precision=hi)


def init_params(key, *, dim_q, dim_k, dim_v, head_num, dim_QK, dim_V, dim_out, width):
    ks = jax.random.split(key, 5)

    def lin(kk, fan_in, fan_out):
        bound = 1.0 / math.sqrt(fan_in)
        return jax.random.uniform(kk, (fan_in, fan_out), jnp.float32, -bound, bound)

    bound_b = 1.0 / math.sqrt(width)   # Conv1d fan_in = in_channels * kernel = width
    return dict(
        wq=lin(ks[0], dim_q, head_num * dim_QK),
        wk=lin(ks[1], dim_k, head_num * dim_QK),
        wv=lin(ks[2], dim_v, head_num * dim_V),
        wo=lin(ks[3], head_num * dim_V, dim_out),
        conv_bias=jax.random.uniform(ks[4], (width,), jnp.float32, -bound_b, bound_b),
    )


# ---------------------------------------------------------------------------
if __name__ == "__main__":
    batch = 2
    dim_q, dim_k, dim_v = 32, 16, 16
    head_num, dim_QK, dim_V = 4, 8, 8
    dim_out = 32
    span, stride = 4, 2
    length_kv = 8
    length_q = length_kv * stride          # = 16, required by the module's reshape
    width = math.ceil(span / stride)

    key = jax.random.PRNGKey(0)
    kq, kk, kv_, kp = jax.random.split(key, 4)
    q = jax.random.normal(kq, (batch, length_q, dim_q), jnp.float32)
    k = jax.random.normal(kk, (batch, length_kv, dim_k), jnp.float32)
    v = jax.random.normal(kv_, (batch, length_kv, dim_v), jnp.float32)
    params = init_params(kp, dim_q=dim_q, dim_k=dim_k, dim_v=dim_v,
                         head_num=head_num, dim_QK=dim_QK, dim_V=dim_V,
                         dim_out=dim_out, width=width)

    fwd = jax.jit(functools.partial(sparse_mha_decoder, head_num=head_num,
                                    dim_QK=dim_QK, dim_V=dim_V,
                                    span=span, stride=stride))
    out = jax.block_until_ready(fwd(q, k, v, params))
    assert out.shape == (batch, length_q, dim_out)
    assert bool(jnp.all(jnp.isfinite(out)))

    ref = reference_forward(q, k, v, params, head_num=head_num, dim_QK=dim_QK,
                            dim_V=dim_V, span=span, stride=stride)
    err = float(jnp.max(jnp.abs(out - ref)))
    assert bool(jnp.allclose(out, ref, rtol=1e-2, atol=1e-2)), f"max abs err {err}"
    print("KERNEL_OK")
</pallas_src>

<mosaic_0001>
module attributes {stable_mosaic.version = 11 : i64} {
  func.func @sparse_mha_decoder_kernel(%arg0: memref<32x32xf32, #tpu.memory_space<vmem>>, %arg1: memref<16x16xf32, #tpu.memory_space<vmem>>, %arg2: memref<16x16xf32, #tpu.memory_space<vmem>>, %arg3: memref<32x32xf32, #tpu.memory_space<vmem>>, %arg4: memref<16x32xf32, #tpu.memory_space<vmem>>, %arg5: memref<16x32xf32, #tpu.memory_space<vmem>>, %arg6: memref<32x128xf32, #tpu.memory_space<vmem>>, %arg7: memref<4x16x1xf32, #tpu.memory_space<vmem>>, %arg8: memref<2x16x1xf32, #tpu.memory_space<vmem>>, %arg9: memref<32x128xf32, #tpu.memory_space<vmem>>) attributes {dimension_semantics = [], scalar_prefetch = 0 : i64, scratch_operands = 0 : i64, tpu.core_type = #tpu.core_type<tc>} {
    %c0 = arith.constant 0 : index
    %c0_0 = arith.constant 0 : index
    %0 = vector.load %arg1[%c0, %c0_0] : memref<16x16xf32, #tpu.memory_space<vmem>>, vector<16x16xf32>
    %c0_1 = arith.constant 0 : index
    %c0_2 = arith.constant 0 : index
    %1 = vector.load %arg4[%c0_1, %c0_2] : memref<16x32xf32, #tpu.memory_space<vmem>>, vector<16x32xf32>
    %cst = arith.constant dense<0.000000e+00> : vector<16x32xf32>
    %2 = tpu.matmul %0, %1, %cst {dimension_numbers = #tpu.dot_dimension_numbers<[1], [0], [0], [1], [0, 0, 1, 1], [], []>} : vector<16x16xf32>, vector<16x32xf32>, vector<16x32xf32> -> vector<16x32xf32>
    %c0_3 = arith.constant 0 : index
    %c0_4 = arith.constant 0 : index
    %3 = vector.load %arg2[%c0_3, %c0_4] : memref<16x16xf32, #tpu.memory_space<vmem>>, vector<16x16xf32>
    %c0_5 = arith.constant 0 : index
    %c0_6 = arith.constant 0 : index
    %4 = vector.load %arg5[%c0_5, %c0_6] : memref<16x32xf32, #tpu.memory_space<vmem>>, vector<16x32xf32>
    %cst_7 = arith.constant dense<0.000000e+00> : vector<16x32xf32>
    %5 = tpu.matmul %3, %4, %cst_7 {dimension_numbers = #tpu.dot_dimension_numbers<[1], [0], [0], [1], [0, 0, 1, 1], [], []>} : vector<16x16xf32>, vector<16x32xf32>, vector<16x32xf32> -> vector<16x32xf32>
    %c0_8 = arith.constant 0 : index
    %c0_9 = arith.constant 0 : index
    %6 = vector.load %arg0[%c0_8, %c0_9] : memref<32x32xf32, #tpu.memory_space<vmem>>, vector<32x32xf32>
    %c0_10 = arith.constant 0 : index
    %c0_11 = arith.constant 0 : index
    %7 = vector.load %arg3[%c0_10, %c0_11] : memref<32x32xf32, #tpu.memory_space<vmem>>, vector<32x32xf32>
    %cst_12 = arith.constant dense<0.000000e+00> : vector<32x32xf32>
    %8 = tpu.matmul %6, %7, %cst_12 {dimension_numbers = #tpu.dot_dimension_numbers<[1], [0], [0], [1], [0, 0, 1, 1], [], []>} : vector<32x32xf32>, vector<32x32xf32>, vector<32x32xf32> -> vector<32x32xf32>
    %cst_13 = arith.constant 0.000000e+00 : f32
    %9 = vector.broadcast %cst_13 : f32 to vector<1x32xf32>
    %10 = vector.extract_strided_slice %2 {offsets = [0, 0], sizes = [15, 32], strides = [1, 1]} : vector<16x32xf32> to vector<15x32xf32>
    %11 = tpu.concatenate %9, %10 in 0 : vector<1x32xf32>, vector<15x32xf32> -> vector<16x32xf32>
    %cst_14 = arith.constant 0.000000e+00 : f32
    %12 = vector.broadcast %cst_14 : f32 to vector<1x32xf32>
    %13 = vector.extract_strided_slice %5 {offsets = [0, 0], sizes = [15, 32], strides = [1, 1]} : vector<16x32xf32> to vector<15x32xf32>
    %14 = tpu.concatenate %12, %13 in 0 : vector<1x32xf32>, vector<15x32xf32> -> vector<16x32xf32>
    %15 = vector.extract_strided_slice %11 {offsets = [0, 0], sizes = [16, 8], strides = [1, 1]} : vector<16x32xf32> to vector<16x8xf32>
    %16 = vector.extract_strided_slice %2 {offsets = [0, 0], sizes = [16, 8], strides = [1, 1]} : vector<16x32xf32> to vector<16x8xf32>
    %17 = vector.extract_strided_slice %11 {offsets = [0, 8], sizes = [16, 8], strides = [1, 1]} : vector<16x32xf32> to vector<16x8xf32>
    %18 = vector.extract_strided_slice %2 {offsets = [0, 8], sizes = [16, 8], strides = [1, 1]} : vector<16x32xf32> to vector<16x8xf32>
    %19 = vector.extract_strided_slice %11 {offsets = [0, 16], sizes = [16, 8], strides = [1, 1]} : vector<16x32xf32> to vector<16x8xf32>
    %20 = vector.extract_strided_slice %2 {offsets = [0, 16], sizes = [16, 8], strides = [1, 1]} : vector<16x32xf32> to vector<16x8xf32>
    %21 = vector.extract_strided_slice %11 {offsets = [0, 24], sizes = [16, 8], strides = [1, 1]} : vector<16x32xf32> to vector<16x8xf32>
    %22 = vector.extract_strided_slice %2 {offsets = [0, 24], sizes = [16, 8], strides = [1, 1]} : vector<16x32xf32> to vector<16x8xf32>
    %23 = vector.extract_strided_slice %14 {offsets = [0, 0], sizes = [16, 8], strides = [1, 1]} : vector<16x32xf32> to vector<16x8xf32>
    %24 = vector.extract_strided_slice %5 {offsets = [0, 0], sizes = [16, 8], strides = [1, 1]} : vector<16x32xf32> to vector<16x8xf32>
    %25 = vector.extract_strided_slice %14 {offsets = [0, 8], sizes = [16, 8], strides = [1, 1]} : vector<16x32xf32> to vector<16x8xf32>
    %26 = vector.extract_strided_slice %5 {offsets = [0, 8], sizes = [16, 8], strides = [1, 1]} : vector<16x32xf32> to vector<16x8xf32>
    %27 = vector.extract_strided_slice %14 {offsets = [0, 16], sizes = [16, 8], strides = [1, 1]} : vector<16x32xf32> to vector<16x8xf32>
    %28 = vector.extract_strided_slice %5 {offsets = [0, 16], sizes = [16, 8], strides = [1, 1]} : vector<16x32xf32> to vector<16x8xf32>
    %29 = vector.extract_strided_slice %14 {offsets = [0, 24], sizes = [16, 8], strides = [1, 1]} : vector<16x32xf32> to vector<16x8xf32>
    %30 = vector.extract_strided_slice %5 {offsets = [0, 24], sizes = [16, 8], strides = [1, 1]} : vector<16x32xf32> to vector<16x8xf32>
    %c0_15 = arith.constant 0 : index
    %c0_16 = arith.constant 0 : index
    %c0_17 = arith.constant 0 : index
    %31 = vector.load %arg8[%c0_15, %c0_16, %c0_17] : memref<2x16x1xf32, #tpu.memory_space<vmem>>, vector<1x16x1xf32>
    %32 = vector.shape_cast %31 : vector<1x16x1xf32> to vector<16x1xf32>
    %c1 = arith.constant 1 : index
    %c0_18 = arith.constant 0 : index
    %c0_19 = arith.constant 0 : index
    %33 = vector.load %arg8[%c1, %c0_18, %c0_19] : memref<2x16x1xf32, #tpu.memory_space<vmem>>, vector<1x16x1xf32>
    %34 = vector.shape_cast %33 : vector<1x16x1xf32> to vector<16x1xf32>
    %35 = vector.extract_strided_slice %8 {offsets = [0, 0], sizes = [16, 32], strides = [1, 1]} : vector<32x32xf32> to vector<16x32xf32>
    %36 = vector.extract_strided_slice %35 {offsets = [0, 0], sizes = [16, 8], strides = [1, 1]} : vector<16x32xf32> to vector<16x8xf32>
    %cst_20 = arith.constant dense<0.000000e+00> : vector<16xf32>
    %37 = vector.multi_reduction <add>, %36, %cst_20 [1] : vector<16x8xf32> to vector<16xf32>
    %38 = vector.shape_cast %37 : vector<16xf32> to vector<16x1xf32>
    %39 = arith.mulf %36, %15 : vector<16x8xf32>
    %cst_21 = arith.constant dense<0.000000e+00> : vector<16xf32>
    %40 = vector.multi_reduction <add>, %39, %cst_21 [1] : vector<16x8xf32> to vector<16xf32>
    %41 = vector.shape_cast %40 : vector<16xf32> to vector<16x1xf32>
    %42 = arith.mulf %32, %38 : vector<16x1xf32>
    %43 = arith.addf %41, %42 : vector<16x1xf32>
    %c0_22 = arith.constant 0 : index
    %c0_23 = arith.constant 0 : index
    %c0_24 = arith.constant 0 : index
    %44 = vector.load %arg7[%c0_22, %c0_23, %c0_24] : memref<4x16x1xf32, #tpu.memory_space<vmem>>, vector<1x16x1xf32>
    %45 = vector.shape_cast %44 : vector<1x16x1xf32> to vector<16x1xf32>
    %46 = arith.addf %43, %45 : vector<16x1xf32>
    %47 = arith.mulf %36, %16 : vector<16x8xf32>
    %cst_25 = arith.constant dense<0.000000e+00> : vector<16xf32>
    %48 = vector.multi_reduction <add>, %47, %cst_25 [1] : vector<16x8xf32> to vector<16xf32>
    %49 = vector.shape_cast %48 : vector<16xf32> to vector<16x1xf32>
    %50 = arith.mulf %34, %38 : vector<16x1xf32>
    %51 = arith.addf %49, %50 : vector<16x1xf32>
    %c1_26 = arith.constant 1 : index
    %c0_27 = arith.constant 0 : index
    %c0_28 = arith.constant 0 : index
    %52 = vector.load %arg7[%c1_26, %c0_27, %c0_28] : memref<4x16x1xf32, #tpu.memory_space<vmem>>, vector<1x16x1xf32>
    %53 = vector.shape_cast %52 : vector<1x16x1xf32> to vector<16x1xf32>
    %54 = arith.addf %51, %53 : vector<16x1xf32>
    %55 = arith.maximumf %46, %54 : vector<16x1xf32>
    %56 = arith.subf %46, %55 : vector<16x1xf32>
    %57 = math.exp %56 : vector<16x1xf32>
    %58 = arith.subf %54, %55 : vector<16x1xf32>
    %59 = math.exp %58 : vector<16x1xf32>
    %60 = arith.addf %57, %59 : vector<16x1xf32>
    %61 = tpu.reciprocal %60 {approx = true} : vector<16x1xf32> -> vector<16x1xf32>
    %62 = arith.mulf %57, %61 : vector<16x1xf32>
    %63 = vector.broadcast %62 : vector<16x1xf32> to vector<16x8xf32>
    %64 = arith.mulf %63, %23 : vector<16x8xf32>
    %65 = arith.mulf %62, %32 : vector<16x1xf32>
    %66 = arith.mulf %59, %61 : vector<16x1xf32>
    %67 = vector.broadcast %66 : vector<16x1xf32> to vector<16x8xf32>
    %68 = arith.mulf %67, %24 : vector<16x8xf32>
    %69 = arith.addf %64, %68 : vector<16x8xf32>
    %70 = arith.mulf %66, %34 : vector<16x1xf32>
    %71 = arith.addf %65, %70 : vector<16x1xf32>
    %72 = vector.broadcast %71 : vector<16x1xf32> to vector<16x8xf32>
    %73 = arith.addf %69, %72 : vector<16x8xf32>
    %74 = vector.extract_strided_slice %35 {offsets = [0, 8], sizes = [16, 8], strides = [1, 1]} : vector<16x32xf32> to vector<16x8xf32>
    %cst_29 = arith.constant dense<0.000000e+00> : vector<16xf32>
    %75 = vector.multi_reduction <add>, %74, %cst_29 [1] : vector<16x8xf32> to vector<16xf32>
    %76 = vector.shape_cast %75 : vector<16xf32> to vector<16x1xf32>
    %77 = arith.mulf %74, %17 : vector<16x8xf32>
    %cst_30 = arith.constant dense<0.000000e+00> : vector<16xf32>
    %78 = vector.multi_reduction <add>, %77, %cst_30 [1] : vector<16x8xf32> to vector<16xf32>
    %79 = vector.shape_cast %78 : vector<16xf32> to vector<16x1xf32>
    %80 = arith.mulf %32, %76 : vector<16x1xf32>
    %81 = arith.addf %79, %80 : vector<16x1xf32>
    %c0_31 = arith.constant 0 : index
    %c0_32 = arith.constant 0 : index
    %c0_33 = arith.constant 0 : index
    %82 = vector.load %arg7[%c0_31, %c0_32, %c0_33] : memref<4x16x1xf32, #tpu.memory_space<vmem>>, vector<1x16x1xf32>
    %83 = vector.shape_cast %82 : vector<1x16x1xf32> to vector<16x1xf32>
    %84 = arith.addf %81, %83 : vector<16x1xf32>
    %85 = arith.mulf %74, %18 : vector<16x8xf32>
    %cst_34 = arith.constant dense<0.000000e+00> : vector<16xf32>
    %86 = vector.multi_reduction <add>, %85, %cst_34 [1] : vector<16x8xf32> to vector<16xf32>
    %87 = vector.shape_cast %86 : vector<16xf32> to vector<16x1xf32>
    %88 = arith.mulf %34, %76 : vector<16x1xf32>
    %89 = arith.addf %87, %88 : vector<16x1xf32>
    %c1_35 = arith.constant 1 : index
    %c0_36 = arith.constant 0 : index
    %c0_37 = arith.constant 0 : index
    %90 = vector.load %arg7[%c1_35, %c0_36, %c0_37] : memref<4x16x1xf32, #tpu.memory_space<vmem>>, vector<1x16x1xf32>
    %91 = vector.shape_cast %90 : vector<1x16x1xf32> to vector<16x1xf32>
    %92 = arith.addf %89, %91 : vector<16x1xf32>
    %93 = arith.maximumf %84, %92 : vector<16x1xf32>
    %94 = arith.subf %84, %93 : vector<16x1xf32>
    %95 = math.exp %94 : vector<16x1xf32>
    %96 = arith.subf %92, %93 : vector<16x1xf32>
    %97 = math.exp %96 : vector<16x1xf32>
    %98 = arith.addf %95, %97 : vector<16x1xf32>
    %99 = tpu.reciprocal %98 {approx = true} : vector<16x1xf32> -> vector<16x1xf32>
    %100 = arith.mulf %95, %99 : vector<16x1xf32>
    %101 = vector.broadcast %100 : vector<16x1xf32> to vector<16x8xf32>
    %102 = arith.mulf %101, %25 : vector<16x8xf32>
    %103 = arith.mulf %100, %32 : vector<16x1xf32>
    %104 = arith.mulf %97, %99 : vector<16x1xf32>
    %105 = vector.broadcast %104 : vector<16x1xf32> to vector<16x8xf32>
    %106 = arith.mulf %105, %26 : vector<16x8xf32>
    %107 = arith.addf %102, %106 : vector<16x8xf32>
    %108 = arith.mulf %104, %34 : vector<16x1xf32>
    %109 = arith.addf %103, %108 : vector<16x1xf32>
    %110 = vector.broadcast %109 : vector<16x1xf32> to vector<16x8xf32>
    %111 = arith.addf %107, %110 : vector<16x8xf32>
    %112 = vector.extract_strided_slice %35 {offsets = [0, 16], sizes = [16, 8], strides = [1, 1]} : vector<16x32xf32> to vector<16x8xf32>
    %cst_38 = arith.constant dense<0.000000e+00> : vector<16xf32>
    %113 = vector.multi_reduction <add>, %112, %cst_38 [1] : vector<16x8xf32> to vector<16xf32>
    %114 = vector.shape_cast %113 : vector<16xf32> to vector<16x1xf32>
    %115 = arith.mulf %112, %19 : vector<16x8xf32>
    %cst_39 = arith.constant dense<0.000000e+00> : vector<16xf32>
    %116 = vector.multi_reduction <add>, %115, %cst_39 [1] : vector<16x8xf32> to vector<16xf32>
    %117 = vector.shape_cast %116 : vector<16xf32> to vector<16x1xf32>
    %118 = arith.mulf %32, %114 : vector<16x1xf32>
    %119 = arith.addf %117, %118 : vector<16x1xf32>
    %c0_40 = arith.constant 0 : index
    %c0_41 = arith.constant 0 : index
    %c0_42 = arith.constant 0 : index
    %120 = vector.load %arg7[%c0_40, %c0_41, %c0_42] : memref<4x16x1xf32, #tpu.memory_space<vmem>>, vector<1x16x1xf32>
    %121 = vector.shape_cast %120 : vector<1x16x1xf32> to vector<16x1xf32>
    %122 = arith.addf %119, %121 : vector<16x1xf32>
    %123 = arith.mulf %112, %20 : vector<16x8xf32>
    %cst_43 = arith.constant dense<0.000000e+00> : vector<16xf32>
    %124 = vector.multi_reduction <add>, %123, %cst_43 [1] : vector<16x8xf32> to vector<16xf32>
    %125 = vector.shape_cast %124 : vector<16xf32> to vector<16x1xf32>
    %126 = arith.mulf %34, %114 : vector<16x1xf32>
    %127 = arith.addf %125, %126 : vector<16x1xf32>
    %c1_44 = arith.constant 1 : index
    %c0_45 = arith.constant 0 : index
    %c0_46 = arith.constant 0 : index
    %128 = vector.load %arg7[%c1_44, %c0_45, %c0_46] : memref<4x16x1xf32, #tpu.memory_space<vmem>>, vector<1x16x1xf32>
    %129 = vector.shape_cast %128 : vector<1x16x1xf32> to vector<16x1xf32>
    %130 = arith.addf %127, %129 : vector<16x1xf32>
    %131 = arith.maximumf %122, %130 : vector<16x1xf32>
    %132 = arith.subf %122, %131 : vector<16x1xf32>
    %133 = math.exp %132 : vector<16x1xf32>
    %134 = arith.subf %130, %131 : vector<16x1xf32>
    %135 = math.exp %134 : vector<16x1xf32>
    %136 = arith.addf %133, %135 : vector<16x1xf32>
    %137 = tpu.reciprocal %136 {approx = true} : vector<16x1xf32> -> vector<16x1xf32>
    %138 = arith.mulf %133, %137 : vector<16x1xf32>
    %139 = vector.broadcast %138 : vector<16x1xf32> to vector<16x8xf32>
    %140 = arith.mulf %139, %27 : vector<16x8xf32>
    %141 = arith.mulf %138, %32 : vector<16x1xf32>
    %142 = arith.mulf %135, %137 : vector<16x1xf32>
    %143 = vector.broadcast %142 : vector<16x1xf32> to vector<16x8xf32>
    %144 = arith.mulf %143, %28 : vector<16x8xf32>
    %145 = arith.addf %140, %144 : vector<16x8xf32>
    %146 = arith.mulf %142, %34 : vector<16x1xf32>
    %147 = arith.addf %141, %146 : vector<16x1xf32>
    %148 = vector.broadcast %147 : vector<16x1xf32> to vector<16x8xf32>
    %149 = arith.addf %145, %148 : vector<16x8xf32>
    %150 = vector.extract_strided_slice %35 {offsets = [0, 24], sizes = [16, 8], strides = [1, 1]} : vector<16x32xf32> to vector<16x8xf32>
    %cst_47 = arith.constant dense<0.000000e+00> : vector<16xf32>
    %151 = vector.multi_reduction <add>, %150, %cst_47 [1] : vector<16x8xf32> to vector<16xf32>
    %152 = vector.shape_cast %151 : vector<16xf32> to vector<16x1xf32>
    %153 = arith.mulf %150, %21 : vector<16x8xf32>
    %cst_48 = arith.constant dense<0.000000e+00> : vector<16xf32>
    %154 = vector.multi_reduction <add>, %153, %cst_48 [1] : vector<16x8xf32> to vector<16xf32>
    %155 = vector.shape_cast %154 : vector<16xf32> to vector<16x1xf32>
    %156 = arith.mulf %32, %152 : vector<16x1xf32>
    %157 = arith.addf %155, %156 : vector<16x1xf32>
    %c0_49 = arith.constant 0 : index
    %c0_50 = arith.constant 0 : index
    %c0_51 = arith.constant 0 : index
    %158 = vector.load %arg7[%c0_49, %c0_50, %c0_51] : memref<4x16x1xf32, #tpu.memory_space<vmem>>, vector<1x16x1xf32>
    %159 = vector.shape_cast %158 : vector<1x16x1xf32> to vector<16x1xf32>
    %160 = arith.addf %157, %159 : vector<16x1xf32>
    %161 = arith.mulf %150, %22 : vector<16x8xf32>
    %cst_52 = arith.constant dense<0.000000e+00> : vector<16xf32>
    %162 = vector.multi_reduction <add>, %161, %cst_52 [1] : vector<16x8xf32> to vector<16xf32>
    %163 = vector.shape_cast %162 : vector<16xf32> to vector<16x1xf32>
    %164 = arith.mulf %34, %152 : vector<16x1xf32>
    %165 = arith.addf %163, %164 : vector<16x1xf32>
    %c1_53 = arith.constant 1 : index
    %c0_54 = arith.constant 0 : index
    %c0_55 = arith.constant 0 : index
    %166 = vector.load %arg7[%c1_53, %c0_54, %c0_55] : memref<4x16x1xf32, #tpu.memory_space<vmem>>, vector<1x16x1xf32>
    %167 = vector.shape_cast %166 : vector<1x16x1xf32> to vector<16x1xf32>
    %168 = arith.addf %165, %167 : vector<16x1xf32>
    %169 = arith.maximumf %160, %168 : vector<16x1xf32>
    %170 = arith.subf %160, %169 : vector<16x1xf32>
    %171 = math.exp %170 : vector<16x1xf32>
    %172 = arith.subf %168, %169 : vector<16x1xf32>
    %173 = math.exp %172 : vector<16x1xf32>
    %174 = arith.addf %171, %173 : vector<16x1xf32>
    %175 = tpu.reciprocal %174 {approx = true} : vector<16x1xf32> -> vector<16x1xf32>
    %176 = arith.mulf %171, %175 : vector<16x1xf32>
    %177 = vector.broadcast %176 : vector<16x1xf32> to vector<16x8xf32>
    %178 = arith.mulf %177, %29 : vector<16x8xf32>
    %179 = arith.mulf %176, %32 : vector<16x1xf32>
    %180 = arith.mulf %173, %175 : vector<16x1xf32>
    %181 = vector.broadcast %180 : vector<16x1xf32> to vector<16x8xf32>
    %182 = arith.mulf %181, %30 : vector<16x8xf32>
    %183 = arith.addf %178, %182 : vector<16x8xf32>
    %184 = arith.mulf %180, %34 : vector<16x1xf32>
    %185 = arith.addf %179, %184 : vector<16x1xf32>
    %186 = vector.broadcast %185 : vector<16x1xf32> to vector<16x8xf32>
    %187 = arith.addf %183, %186 : vector<16x8xf32>
    %188 = tpu.concatenate %73, %111, %149, %187 in 1 : vector<16x8xf32>, vector<16x8xf32>, vector<16x8xf32>, vector<16x8xf32> -> vector<16x32xf32>
    %189 = vector.extract_strided_slice %8 {offsets = [16, 0], sizes = [16, 32], strides = [1, 1]} : vector<32x32xf32> to vector<16x32xf32>
    %190 = vector.extract_strided_slice %189 {offsets = [0, 0], sizes = [16, 8], strides = [1, 1]} : vector<16x32xf32> to vector<16x8xf32>
    %cst_56 = arith.constant dense<0.000000e+00> : vector<16xf32>
    %191 = vector.multi_reduction <add>, %190, %cst_56 [1] : vector<16x8xf32> to vector<16xf32>
    %192 = vector.shape_cast %191 : vector<16xf32> to vector<16x1xf32>
    %193 = arith.mulf %190, %15 : vector<16x8xf32>
    %cst_57 = arith.constant dense<0.000000e+00> : vector<16xf32>
    %194 = vector.multi_reduction <add>, %193, %cst_57 [1] : vector<16x8xf32> to vector<16xf32>
    %195 = vector.shape_cast %194 : vector<16xf32> to vector<16x1xf32>
    %196 = arith.mulf %32, %192 : vector<16x1xf32>
    %197 = arith.addf %195, %196 : vector<16x1xf32>
    %c2 = arith.constant 2 : index
    %c0_58 = arith.constant 0 : index
    %c0_59 = arith.constant 0 : index
    %198 = vector.load %arg7[%c2, %c0_58, %c0_59] : memref<4x16x1xf32, #tpu.memory_space<vmem>>, vector<1x16x1xf32>
    %199 = vector.shape_cast %198 : vector<1x16x1xf32> to vector<16x1xf32>
    %200 = arith.addf %197, %199 : vector<16x1xf32>
    %201 = arith.mulf %190, %16 : vector<16x8xf32>
    %cst_60 = arith.constant dense<0.000000e+00> : vector<16xf32>
    %202 = vector.multi_reduction <add>, %201, %cst_60 [1] : vector<16x8xf32> to vector<16xf32>
    %203 = vector.shape_cast %202 : vector<16xf32> to vector<16x1xf32>
    %204 = arith.mulf %34, %192 : vector<16x1xf32>
    %205 = arith.addf %203, %204 : vector<16x1xf32>
    %c3 = arith.constant 3 : index
    %c0_61 = arith.constant 0 : index
    %c0_62 = arith.constant 0 : index
    %206 = vector.load %arg7[%c3, %c0_61, %c0_62] : memref<4x16x1xf32, #tpu.memory_space<vmem>>, vector<1x16x1xf32>
    %207 = vector.shape_cast %206 : vector<1x16x1xf32> to vector<16x1xf32>
    %208 = arith.addf %205, %207 : vector<16x1xf32>
    %209 = arith.maximumf %200, %208 : vector<16x1xf32>
    %210 = arith.subf %200, %209 : vector<16x1xf32>
    %211 = math.exp %210 : vector<16x1xf32>
    %212 = arith.subf %208, %209 : vector<16x1xf32>
    %213 = math.exp %212 : vector<16x1xf32>
    %214 = arith.addf %211, %213 : vector<16x1xf32>
    %215 = tpu.reciprocal %214 {approx = true} : vector<16x1xf32> -> vector<16x1xf32>
    %216 = arith.mulf %211, %215 : vector<16x1xf32>
    %217 = vector.broadcast %216 : vector<16x1xf32> to vector<16x8xf32>
    %218 = arith.mulf %217, %23 : vector<16x8xf32>
    %219 = arith.mulf %216, %32 : vector<16x1xf32>
    %220 = arith.mulf %213, %215 : vector<16x1xf32>
    %221 = vector.broadcast %220 : vector<16x1xf32> to vector<16x8xf32>
    %222 = arith.mulf %221, %24 : vector<16x8xf32>
    %223 = arith.addf %218, %222 : vector<16x8xf32>
    %224 = arith.mulf %220, %34 : vector<16x1xf32>
    %225 = arith.addf %219, %224 : vector<16x1xf32>
    %226 = vector.broadcast %225 : vector<16x1xf32> to vector<16x8xf32>
    %227 = arith.addf %223, %226 : vector<16x8xf32>
    %228 = vector.extract_strided_slice %189 {offsets = [0, 8], sizes = [16, 8], strides = [1, 1]} : vector<16x32xf32> to vector<16x8xf32>
    %cst_63 = arith.constant dense<0.000000e+00> : vector<16xf32>
    %229 = vector.multi_reduction <add>, %228, %cst_63 [1] : vector<16x8xf32> to vector<16xf32>
    %230 = vector.shape_cast %229 : vector<16xf32> to vector<16x1xf32>
    %231 = arith.mulf %228, %17 : vector<16x8xf32>
    %cst_64 = arith.constant dense<0.000000e+00> : vector<16xf32>
    %232 = vector.multi_reduction <add>, %231, %cst_64 [1] : vector<16x8xf32> to vector<16xf32>
    %233 = vector.shape_cast %232 : vector<16xf32> to vector<16x1xf32>
    %234 = arith.mulf %32, %230 : vector<16x1xf32>
    %235 = arith.addf %233, %234 : vector<16x1xf32>
    %c2_65 = arith.constant 2 : index
    %c0_66 = arith.constant 0 : index
    %c0_67 = arith.constant 0 : index
    %236 = vector.load %arg7[%c2_65, %c0_66, %c0_67] : memref<4x16x1xf32, #tpu.memory_space<vmem>>, vector<1x16x1xf32>
    %237 = vector.shape_cast %236 : vector<1x16x1xf32> to vector<16x1xf32>
    %238 = arith.addf %235, %237 : vector<16x1xf32>
    %239 = arith.mulf %228, %18 : vector<16x8xf32>
    %cst_68 = arith.constant dense<0.000000e+00> : vector<16xf32>
    %240 = vector.multi_reduction <add>, %239, %cst_68 [1] : vector<16x8xf32> to vector<16xf32>
    %241 = vector.shape_cast %240 : vector<16xf32> to vector<16x1xf32>
    %242 = arith.mulf %34, %230 : vector<16x1xf32>
    %243 = arith.addf %241, %242 : vector<16x1xf32>
    %c3_69 = arith.constant 3 : index
    %c0_70 = arith.constant 0 : index
    %c0_71 = arith.constant 0 : index
    %244 = vector.load %arg7[%c3_69, %c0_70, %c0_71] : memref<4x16x1xf32, #tpu.memory_space<vmem>>, vector<1x16x1xf32>
    %245 = vector.shape_cast %244 : vector<1x16x1xf32> to vector<16x1xf32>
    %246 = arith.addf %243, %245 : vector<16x1xf32>
    %247 = arith.maximumf %238, %246 : vector<16x1xf32>
    %248 = arith.subf %238, %247 : vector<16x1xf32>
    %249 = math.exp %248 : vector<16x1xf32>
    %250 = arith.subf %246, %247 : vector<16x1xf32>
    %251 = math.exp %250 : vector<16x1xf32>
    %252 = arith.addf %249, %251 : vector<16x1xf32>
    %253 = tpu.reciprocal %252 {approx = true} : vector<16x1xf32> -> vector<16x1xf32>
    %254 = arith.mulf %249, %253 : vector<16x1xf32>
    %255 = vector.broadcast %254 : vector<16x1xf32> to vector<16x8xf32>
    %256 = arith.mulf %255, %25 : vector<16x8xf32>
    %257 = arith.mulf %254, %32 : vector<16x1xf32>
    %258 = arith.mulf %251, %253 : vector<16x1xf32>
    %259 = vector.broadcast %258 : vector<16x1xf32> to vector<16x8xf32>
    %260 = arith.mulf %259, %26 : vector<16x8xf32>
    %261 = arith.addf %256, %260 : vector<16x8xf32>
    %262 = arith.mulf %258, %34 : vector<16x1xf32>
    %263 = arith.addf %257, %262 : vector<16x1xf32>
    %264 = vector.broadcast %263 : vector<16x1xf32> to vector<16x8xf32>
    %265 = arith.addf %261, %264 : vector<16x8xf32>
    %266 = vector.extract_strided_slice %189 {offsets = [0, 16], sizes = [16, 8], strides = [1, 1]} : vector<16x32xf32> to vector<16x8xf32>
    %cst_72 = arith.constant dense<0.000000e+00> : vector<16xf32>
    %267 = vector.multi_reduction <add>, %266, %cst_72 [1] : vector<16x8xf32> to vector<16xf32>
    %268 = vector.shape_cast %267 : vector<16xf32> to vector<16x1xf32>
    %269 = arith.mulf %266, %19 : vector<16x8xf32>
    %cst_73 = arith.constant dense<0.000000e+00> : vector<16xf32>
    %270 = vector.multi_reduction <add>, %269, %cst_73 [1] : vector<16x8xf32> to vector<16xf32>
    %271 = vector.shape_cast %270 : vector<16xf32> to vector<16x1xf32>
    %272 = arith.mulf %32, %268 : vector<16x1xf32>
    %273 = arith.addf %271, %272 : vector<16x1xf32>
    %c2_74 = arith.constant 2 : index
    %c0_75 = arith.constant 0 : index
    %c0_76 = arith.constant 0 : index
    %274 = vector.load %arg7[%c2_74, %c0_75, %c0_76] : memref<4x16x1xf32, #tpu.memory_space<vmem>>, vector<1x16x1xf32>
    %275 = vector.shape_cast %274 : vector<1x16x1xf32> to vector<16x1xf32>
    %276 = arith.addf %273, %275 : vector<16x1xf32>
    %277 = arith.mulf %266, %20 : vector<16x8xf32>
    %cst_77 = arith.constant dense<0.000000e+00> : vector<16xf32>
    %278 = vector.multi_reduction <add>, %277, %cst_77 [1] : vector<16x8xf32> to vector<16xf32>
    %279 = vector.shape_cast %278 : vector<16xf32> to vector<16x1xf32>
    %280 = arith.mulf %34, %268 : vector<16x1xf32>
    %281 = arith.addf %279, %280 : vector<16x1xf32>
    %c3_78 = arith.constant 3 : index
    %c0_79 = arith.constant 0 : index
    %c0_80 = arith.constant 0 : index
    %282 = vector.load %arg7[%c3_78, %c0_79, %c0_80] : memref<4x16x1xf32, #tpu.memory_space<vmem>>, vector<1x16x1xf32>
    %283 = vector.shape_cast %282 : vector<1x16x1xf32> to vector<16x1xf32>
    %284 = arith.addf %281, %283 : vector<16x1xf32>
    %285 = arith.maximumf %276, %284 : vector<16x1xf32>
    %286 = arith.subf %276, %285 : vector<16x1xf32>
    %287 = math.exp %286 : vector<16x1xf32>
    %288 = arith.subf %284, %285 : vector<16x1xf32>
    %289 = math.exp %288 : vector<16x1xf32>
    %290 = arith.addf %287, %289 : vector<16x1xf32>
    %291 = tpu.reciprocal %290 {approx = true} : vector<16x1xf32> -> vector<16x1xf32>
    %292 = arith.mulf %287, %291 : vector<16x1xf32>
    %293 = vector.broadcast %292 : vector<16x1xf32> to vector<16x8xf32>
    %294 = arith.mulf %293, %27 : vector<16x8xf32>
    %295 = arith.mulf %292, %32 : vector<16x1xf32>
    %296 = arith.mulf %289, %291 : vector<16x1xf32>
    %297 = vector.broadcast %296 : vector<16x1xf32> to vector<16x8xf32>
    %298 = arith.mulf %297, %28 : vector<16x8xf32>
    %299 = arith.addf %294, %298 : vector<16x8xf32>
    %300 = arith.mulf %296, %34 : vector<16x1xf32>
    %301 = arith.addf %295, %300 : vector<16x1xf32>
    %302 = vector.broadcast %301 : vector<16x1xf32> to vector<16x8xf32>
    %303 = arith.addf %299, %302 : vector<16x8xf32>
    %304 = vector.extract_strided_slice %189 {offsets = [0, 24], sizes = [16, 8], strides = [1, 1]} : vector<16x32xf32> to vector<16x8xf32>
    %cst_81 = arith.constant dense<0.000000e+00> : vector<16xf32>
    %305 = vector.multi_reduction <add>, %304, %cst_81 [1] : vector<16x8xf32> to vector<16xf32>
    %306 = vector.shape_cast %305 : vector<16xf32> to vector<16x1xf32>
    %307 = arith.mulf %304, %21 : vector<16x8xf32>
    %cst_82 = arith.constant dense<0.000000e+00> : vector<16xf32>
    %308 = vector.multi_reduction <add>, %307, %cst_82 [1] : vector<16x8xf32> to vector<16xf32>
    %309 = vector.shape_cast %308 : vector<16xf32> to vector<16x1xf32>
    %310 = arith.mulf %32, %306 : vector<16x1xf32>
    %311 = arith.addf %309, %310 : vector<16x1xf32>
    %c2_83 = arith.constant 2 : index
    %c0_84 = arith.constant 0 : index
    %c0_85 = arith.constant 0 : index
    %312 = vector.load %arg7[%c2_83, %c0_84, %c0_85] : memref<4x16x1xf32, #tpu.memory_space<vmem>>, vector<1x16x1xf32>
    %313 = vector.shape_cast %312 : vector<1x16x1xf32> to vector<16x1xf32>
    %314 = arith.addf %311, %313 : vector<16x1xf32>
    %315 = arith.mulf %304, %22 : vector<16x8xf32>
    %cst_86 = arith.constant dense<0.000000e+00> : vector<16xf32>
    %316 = vector.multi_reduction <add>, %315, %cst_86 [1] : vector<16x8xf32> to vector<16xf32>
    %317 = vector.shape_cast %316 : vector<16xf32> to vector<16x1xf32>
    %318 = arith.mulf %34, %306 : vector<16x1xf32>
    %319 = arith.addf %317, %318 : vector<16x1xf32>
    %c3_87 = arith.constant 3 : index
    %c0_88 = arith.constant 0 : index
    %c0_89 = arith.constant 0 : index
    %320 = vector.load %arg7[%c3_87, %c0_88, %c0_89] : memref<4x16x1xf32, #tpu.memory_space<vmem>>, vector<1x16x1xf32>
    %321 = vector.shape_cast %320 : vector<1x16x1xf32> to vector<16x1xf32>
    %322 = arith.addf %319, %321 : vector<16x1xf32>
    %323 = arith.maximumf %314, %322 : vector<16x1xf32>
    %324 = arith.subf %314, %323 : vector<16x1xf32>
    %325 = math.exp %324 : vector<16x1xf32>
    %326 = arith.subf %322, %323 : vector<16x1xf32>
    %327 = math.exp %326 : vector<16x1xf32>
    %328 = arith.addf %325, %327 : vector<16x1xf32>
    %329 = tpu.reciprocal %328 {approx = true} : vector<16x1xf32> -> vector<16x1xf32>
    %330 = arith.mulf %325, %329 : vector<16x1xf32>
    %331 = vector.broadcast %330 : vector<16x1xf32> to vector<16x8xf32>
    %332 = arith.mulf %331, %29 : vector<16x8xf32>
    %333 = arith.mulf %330, %32 : vector<16x1xf32>
    %334 = arith.mulf %327, %329 : vector<16x1xf32>
    %335 = vector.broadcast %334 : vector<16x1xf32> to vector<16x8xf32>
    %336 = arith.mulf %335, %30 : vector<16x8xf32>
    %337 = arith.addf %332, %336 : vector<16x8xf32>
    %338 = arith.mulf %334, %34 : vector<16x1xf32>
    %339 = arith.addf %333, %338 : vector<16x1xf32>
    %340 = vector.broadcast %339 : vector<16x1xf32> to vector<16x8xf32>
    %341 = arith.addf %337, %340 : vector<16x8xf32>
    %342 = tpu.concatenate %227, %265, %303, %341 in 1 : vector<16x8xf32>, vector<16x8xf32>, vector<16x8xf32>, vector<16x8xf32> -> vector<16x32xf32>
    %343 = tpu.concatenate %188, %342 in 0 : vector<16x32xf32>, vector<16x32xf32> -> vector<32x32xf32>
    %c0_90 = arith.constant 0 : index
    %c0_91 = arith.constant 0 : index
    %344 = vector.load %arg6[%c0_90, %c0_91] : memref<32x128xf32, #tpu.memory_space<vmem>>, vector<32x128xf32>
    %cst_92 = arith.constant dense<0.000000e+00> : vector<32x128xf32>
    %345 = tpu.matmul %343, %344, %cst_92 {dimension_numbers = #tpu.dot_dimension_numbers<[1], [0], [0], [1], [0, 0, 1, 1], [], []>} : vector<32x32xf32>, vector<32x128xf32>, vector<32x128xf32> -> vector<32x128xf32>
    %c0_93 = arith.constant 0 : index
    %c0_94 = arith.constant 0 : index
    %346 = vector.load %arg9[%c0_93, %c0_94] : memref<32x128xf32, #tpu.memory_space<vmem>>, vector<32x128xf32>
    tpu.vector_store %arg9[%c0_93, %c0_94], %345 {strides = array<i32>} : memref<32x128xf32, #tpu.memory_space<vmem>>, vector<32x128xf32>,
    return
  }
}

</mosaic_0001>

<llo_original>
// kernel: sparse_mha_decoder.1
$region0: #{sparse_mha_decoder.1}
  #allocation0 [shape = 'u32[]', space=smem, size = 0x4, offset = 0x4, fixed_abs, tag = 'smem constant byte address 0x4 - core index']
  #allocation1 [shape = 'u32[144,128]{1,0:T(1,128)}', space=vmem, size = 0x12000, scoped, tag = 'internal scratch']
  %s0 = inlined_call_operand.vmem [shape: f32[32,32], index: 0, kind: input, shape index: {}]
  %s1 = inlined_call_operand.vmem [shape: f32[16,16], index: 1, kind: input, shape index: {}]
  %s2 = inlined_call_operand.vmem [shape: f32[16,16], index: 2, kind: input, shape index: {}]
  %s3 = inlined_call_operand.vmem [shape: f32[32,32], index: 3, kind: input, shape index: {}]
  %s4 = inlined_call_operand.vmem [shape: f32[16,32], index: 4, kind: input, shape index: {}]
  %s5 = inlined_call_operand.vmem [shape: f32[16,32], index: 5, kind: input, shape index: {}]
  %s6 = inlined_call_operand.vmem [shape: f32[32,128], index: 6, kind: input, shape index: {}]
  %s7 = inlined_call_operand.vmem [shape: f32[4,16,1], index: 7, kind: input, shape index: {}]
  %s8 = inlined_call_operand.vmem [shape: f32[2,16,1], index: 8, kind: input, shape index: {}]
  %s9 = inlined_call_operand.vmem [shape: f32[32,128], index: 9, kind: output, shape index: {}]
  %s10 = sld [smem:[#allocation0]]
  $region46: #{sparse_mha_decoder.1} parent=0
    _
  %s12 = ssub.s32 1, %s10
  %s13 = scalar_select 0, %s12, %s10
  // Predicated region
  $region2: #{sparse_mha_decoder.1} parent=0 // pred_check
    _
  $region3: #{sparse_mha_decoder.1} parent=0 // pred_check_branch
    %15 = sbr.rel (0) target = $region5
  $region4: #{sparse_mha_decoder.1} parent=0 // pred_region
    _
  $region5: #{sparse_mha_decoder.1} parent=0 // pred_fallthru
    _
  // Predicated region
  $region6: #{sparse_mha_decoder.1} parent=0 // pred_check
    _
  $region7: #{sparse_mha_decoder.1} parent=0 // pred_check_branch
    %17 = sbr.rel (0) target = $region9
  $region8: #{sparse_mha_decoder.1} parent=0 // pred_region
    _
  $region9: #{sparse_mha_decoder.1} parent=0 // pred_fallthru
    _
  // Predicated region
  $region10: #{sparse_mha_decoder.1} parent=0 // pred_check
    _
  $region11: #{sparse_mha_decoder.1} parent=0 // pred_check_branch
    %19 = sbr.rel (0) target = $region13
  $region12: #{sparse_mha_decoder.1} parent=0 // pred_region
    _
  $region13: #{sparse_mha_decoder.1} parent=0 // pred_fallthru
    _
  // Predicated region
  $region14: #{sparse_mha_decoder.1} parent=0 // pred_check
    _
  $region15: #{sparse_mha_decoder.1} parent=0 // pred_check_branch
    %21 = sbr.rel (0) target = $region17
  $region16: #{sparse_mha_decoder.1} parent=0 // pred_region
    _
  $region17: #{sparse_mha_decoder.1} parent=0 // pred_fallthru
    _
  // Predicated region
  $region18: #{sparse_mha_decoder.1} parent=0 // pred_check
    _
  $region19: #{sparse_mha_decoder.1} parent=0 // pred_check_branch
    %23 = sbr.rel (0) target = $region21
  $region20: #{sparse_mha_decoder.1} parent=0 // pred_region
    _
  $region21: #{sparse_mha_decoder.1} parent=0 // pred_fallthru
    _
  // Predicated region
  $region22: #{sparse_mha_decoder.1} parent=0 // pred_check
    _
  $region23: #{sparse_mha_decoder.1} parent=0 // pred_check_branch
    %25 = sbr.rel (0) target = $region25
  $region24: #{sparse_mha_decoder.1} parent=0 // pred_region
    _
  $region25: #{sparse_mha_decoder.1} parent=0 // pred_fallthru
    _
  // Predicated region
  $region26: #{sparse_mha_decoder.1} parent=0 // pred_check
    _
  $region27: #{sparse_mha_decoder.1} parent=0 // pred_check_branch
    %27 = sbr.rel (0) target = $region29
  $region28: #{sparse_mha_decoder.1} parent=0 // pred_region
    _
  $region29: #{sparse_mha_decoder.1} parent=0 // pred_fallthru
    _
  // Predicated region
  $region30: #{sparse_mha_decoder.1} parent=0 // pred_check
    _
  $region31: #{sparse_mha_decoder.1} parent=0 // pred_check_branch
    %29 = sbr.rel (0) target = $region33
  $region32: #{sparse_mha_decoder.1} parent=0 // pred_region
    _
  $region33: #{sparse_mha_decoder.1} parent=0 // pred_fallthru
    _
  // Predicated region
  $region34: #{sparse_mha_decoder.1} parent=0 // pred_check
    _
  $region35: #{sparse_mha_decoder.1} parent=0 // pred_check_branch
    %31 = sbr.rel (0) target = $region37
  $region36: #{sparse_mha_decoder.1} parent=0 // pred_region
    _
  $region37: #{sparse_mha_decoder.1} parent=0 // pred_fallthru
    _
  %v32 = vld [vmem:[%s1] sm:$0xff]
  %v33 = vld [vmem:[%s1 + $0x8] sm:$0xff]
  %v34 = vld [vmem:[%s4] sm:$0xff]
  %v35 = vld [vmem:[%s4 + $0x8] sm:$0xff]
  %vm36 = vcmask 130048
  %v38 = vsel %vm36, %v32, 0
  %v41 = vsel %vm36, %v33, 0
  %43 = vmatprep.subr.mxu0 0.0
  %44 = vmatpush1.msra.mxu0 %v34
  %45 = vmatprep.subr.mxu0 0.0
  %46 = vmatpush1.msra.mxu0 %v35
  %47 = vmatprep.subr.mxu0 0.0
  %48 = vmatpush1.msra.mxu0 0.0
  %49 = vmatprep.subr.mxu0 0.0
  %50 = vmatpush1.msra.mxu0 0.0
  %51 = vmatprep.subr.mxu0 0.0
  %52 = vmatpush1.msra.mxu0 0.0
  %53 = vmatprep.subr.mxu0 0.0
  %54 = vmatpush1.msra.mxu0 0.0
  %55 = vmatprep.subr.mxu0 0.0
  %56 = vmatpush1.msra.mxu0 0.0
  %57 = vmatprep.subr.mxu0 0.0
  %58 = vmatpush1.msra.mxu0 0.0
  %59 = vmatprep.subr.mxu0 0.0
  %60 = vmatpush1.msra.mxu0 0.0
  %61 = vmatprep.subr.mxu0 0.0
  %62 = vmatpush1.msra.mxu0 0.0
  %63 = vmatprep.subr.mxu0 0.0
  %64 = vmatpush1.msra.mxu0 0.0
  %65 = vmatprep.subr.mxu0 0.0
  %66 = vmatpush1.msra.mxu0 0.0
  %67 = vmatprep.subr.mxu0 0.0
  %68 = vmatpush1.msra.mxu0 0.0
  %69 = vmatprep.subr.mxu0 0.0
  %70 = vmatpush1.msra.mxu0 0.0
  %71 = vmatprep.subr.mxu0 0.0
  %72 = vmatpush1.msra.mxu0 0.0
  %73 = vmatprep.subr.mxu0 0.0
  %74 = vmatpush1.msra.mxu0 0.0
  %75 = vmatprep.subr.mxu0 0.0
  %76 = vmatpush1.msra.mxu0 0.0
  %77 = vmatprep.subr.mxu0 0.0
  %78 = vmatpush1.msra.mxu0 0.0
  %79 = vmatprep.subr.mxu0 0.0
  %80 = vmatpush1.msra.mxu0 0.0
  %81 = vmatprep.subr.mxu0 0.0
  %82 = vmatpush1.msra.mxu0 0.0
  %83 = vmatprep.subr.mxu0 0.0
  %84 = vmatpush1.msra.mxu0 0.0
  %85 = vmatprep.subr.mxu0 0.0
  %86 = vmatpush1.msra.mxu0 0.0
  %87 = vmatprep.subr.mxu0 0.0
  %88 = vmatpush1.msra.mxu0 0.0
  %89 = vmatprep.subr.mxu0 0.0
  %90 = vmatpush1.msra.mxu0 0.0
  %91 = vmatprep.subr.mxu0 0.0
  %92 = vmatpush1.msra.mxu0 0.0
  %93 = vmatprep.subr.mxu0 0.0
  %94 = vmatpush1.msra.mxu0 0.0
  %95 = vmatprep.subr.mxu0 0.0
  %96 = vmatpush1.msra.mxu0 0.0
  %97 = vmatprep.subr.mxu0 0.0
  %98 = vmatpush1.msra.mxu0 0.0
  %99 = vmatprep.subr.mxu0 0.0
  %100 = vmatpush1.msra.mxu0 0.0
  %101 = vmatprep.subr.mxu0 0.0
  %102 = vmatpush1.msra.mxu0 0.0
  %103 = vmatprep.subr.mxu0 0.0
  %104 = vmatpush1.msra.mxu0 0.0
  %105 = vmatprep.subr.mxu0 0.0
  %106 = vmatpush1.msra.mxu0 0.0
  %107 = vmatprep.mubr.f32.mxu0 0.0
  %108 = vmatmul.mubr.f32.gmra.mrb[0].mxu0 %v38
  %v109 = vpop.f32.mrb[0].mxu0
  %v110 = vadd.f32 0.0, %v109
  %v111 = vpop.f32.mrb[0].mxu0
  %112 = vmatprep.mubr.f32.mxu0 0.0
  %113 = vmatmul.mubr.f32.gmra.mrb[0].mxu0 %v41
  %v114 = vpop.f32.mrb[0].mxu0
  %v115 = vadd.f32 0.0, %v114
  %v116 = vpop.f32.mrb[0].mxu0
  %117 = vdwg.mxu0
  %v118 = vld [vmem:[%s2] sm:$0xff]
  %v119 = vld [vmem:[%s2 + $0x8] sm:$0xff]
  %v120 = vld [vmem:[%s5] sm:$0xff]
  %v121 = vld [vmem:[%s5 + $0x8] sm:$0xff]
  %v123 = vsel %vm36, %v118, 0
  %v126 = vsel %vm36, %v119, 0
  %128 = vmatprep.subr.mxu0 0.0
  %129 = vmatpush1.msra.mxu0 %v120
  %130 = vmatprep.subr.mxu0 0.0
  %131 = vmatpush1.msra.mxu0 %v121
  %132 = vmatprep.subr.mxu0 0.0
  %133 = vmatpush1.msra.mxu0 0.0
  %134 = vmatprep.subr.mxu0 0.0
  %135 = vmatpush1.msra.mxu0 0.0
  %136 = vmatprep.subr.mxu0 0.0
  %137 = vmatpush1.msra.mxu0 0.0
  %138 = vmatprep.subr.mxu0 0.0
  %139 = vmatpush1.msra.mxu0 0.0
  %140 = vmatprep.subr.mxu0 0.0
  %141 = vmatpush1.msra.mxu0 0.0
  %142 = vmatprep.subr.mxu0 0.0
  %143 = vmatpush1.msra.mxu0 0.0
  %144 = vmatprep.subr.mxu0 0.0
  %145 = vmatpush1.msra.mxu0 0.0
  %146 = vmatprep.subr.mxu0 0.0
  %147 = vmatpush1.msra.mxu0 0.0
  %148 = vmatprep.subr.mxu0 0.0
  %149 = vmatpush1.msra.mxu0 0.0
  %150 = vmatprep.subr.mxu0 0.0
  %151 = vmatpush1.msra.mxu0 0.0
  %152 = vmatprep.subr.mxu0 0.0
  %153 = vmatpush1.msra.mxu0 0.0
  %154 = vmatprep.subr.mxu0 0.0
  %155 = vmatpush1.msra.mxu0 0.0
  %156 = vmatprep.subr.mxu0 0.0
  %157 = vmatpush1.msra.mxu0 0.0
  %158 = vmatprep.subr.mxu0 0.0
  %159 = vmatpush1.msra.mxu0 0.0
  %160 = vmatprep.subr.mxu0 0.0
  %161 = vmatpush1.msra.mxu0 0.0
  %162 = vmatprep.subr.mxu0 0.0
  %163 = vmatpush1.msra.mxu0 0.0
  %164 = vmatprep.subr.mxu0 0.0
  %165 = vmatpush1.msra.mxu0 0.0
  %166 = vmatprep.subr.mxu0 0.0
  %167 = vmatpush1.msra.mxu0 0.0
  %168 = vmatprep.subr.mxu0 0.0
  %169 = vmatpush1.msra.mxu0 0.0
  %170 = vmatprep.subr.mxu0 0.0
  %171 = vmatpush1.msra.mxu0 0.0
  %172 = vmatprep.subr.mxu0 0.0
  %173 = vmatpush1.msra.mxu0 0.0
  %174 = vmatprep.subr.mxu0 0.0
  %175 = vmatpush1.msra.mxu0 0.0
  %176 = vmatprep.subr.mxu0 0.0
  %177 = vmatpush1.msra.mxu0 0.0
  %178 = vmatprep.subr.mxu0 0.0
  %179 = vmatpush1.msra.mxu0 0.0
  %180 = vmatprep.subr.mxu0 0.0
  %181 = vmatpush1.msra.mxu0 0.0
  %182 = vmatprep.subr.mxu0 0.0
  %183 = vmatpush1.msra.mxu0 0.0
  %184 = vmatprep.subr.mxu0 0.0
  %185 = vmatpush1.msra.mxu0 0.0
  %186 = vmatprep.subr.mxu0 0.0
  %187 = vmatpush1.msra.mxu0 0.0
  %188 = vmatprep.subr.mxu0 0.0
  %189 = vmatpush1.msra.mxu0 0.0
  %190 = vmatprep.subr.mxu0 0.0
  %191 = vmatpush1.msra.mxu0 0.0
  %192 = vmatprep.mubr.f32.mxu0 0.0
  %193 = vmatmul.mubr.f32.gmra.mrb[0].mxu0 %v123
  %v194 = vpop.f32.mrb[0].mxu0
  %v195 = vadd.f32 0.0, %v194
  %v196 = vpop.f32.mrb[0].mxu0
  %197 = vmatprep.mubr.f32.mxu0 0.0
  %198 = vmatmul.mubr.f32.gmra.mrb[0].mxu0 %v126
  %v199 = vpop.f32.mrb[0].mxu0
  %v200 = vadd.f32 0.0, %v199
  %v201 = vpop.f32.mrb[0].mxu0
  %202 = vdwg.mxu0
  %v203 = vld [vmem:[%s0] sm:$0xff]
  %v204 = vld [vmem:[%s0 + $0x8] sm:$0xff]
  %v205 = vld [vmem:[%s0 + $0x10] sm:$0xff]
  %v206 = vld [vmem:[%s0 + $0x18] sm:$0xff]
  %v207 = vld [vmem:[%s3] sm:$0xff]
  %v208 = vld [vmem:[%s3 + $0x8] sm:$0xff]
  %v209 = vld [vmem:[%s3 + $0x10] sm:$0xff]
  %v210 = vld [vmem:[%s3 + $0x18] sm:$0xff]
  %vm211 = vcmask 261120
  %v213 = vsel %vm211, %v203, 0
  %v216 = vsel %vm211, %v204, 0
  %v219 = vsel %vm211, %v205, 0
  %v222 = vsel %vm211, %v206, 0
  %224 = vmatprep.subr.mxu0 0.0
  %225 = vmatpush1.msra.mxu0 %v207
  %226 = vmatprep.subr.mxu0 0.0
  %227 = vmatpush1.msra.mxu0 %v208
  %228 = vmatprep.subr.mxu0 0.0
  %229 = vmatpush1.msra.mxu0 %v209
  %230 = vmatprep.subr.mxu0 0.0
  %231 = vmatpush1.msra.mxu0 %v210
  %232 = vmatprep.subr.mxu0 0.0
  %233 = vmatpush1.msra.mxu0 0.0
  %234 = vmatprep.subr.mxu0 0.0
  %235 = vmatpush1.msra.mxu0 0.0
  %236 = vmatprep.subr.mxu0 0.0
  %237 = vmatpush1.msra.mxu0 0.0
  %238 = vmatprep.subr.mxu0 0.0
  %239 = vmatpush1.msra.mxu0 0.0
  %240 = vmatprep.subr.mxu0 0.0
  %241 = vmatpush1.msra.mxu0 0.0
  %242 = vmatprep.subr.mxu0 0.0
  %243 = vmatpush1.msra.mxu0 0.0
  %244 = vmatprep.subr.mxu0 0.0
  %245 = vmatpush1.msra.mxu0 0.0
  %246 = vmatprep.subr.mxu0 0.0
  %247 = vmatpush1.msra.mxu0 0.0
  %248 = vmatprep.subr.mxu0 0.0
  %249 = vmatpush1.msra.mxu0 0.0
  %250 = vmatprep.subr.mxu0 0.0
  %251 = vmatpush1.msra.mxu0 0.0
  %252 = vmatprep.subr.mxu0 0.0
  %253 = vmatpush1.msra.mxu0 0.0
  %254 = vmatprep.subr.mxu0 0.0
  %255 = vmatpush1.msra.mxu0 0.0
  %256 = vmatprep.subr.mxu0 0.0
  %257 = vmatpush1.msra.mxu0 0.0
  %258 = vmatprep.subr.mxu0 0.0
  %259 = vmatpush1.msra.mxu0 0.0
  %260 = vmatprep.subr.mxu0 0.0
  %261 = vmatpush1.msra.mxu0 0.0
  %262 = vmatprep.subr.mxu0 0.0
  %263 = vmatpush1.msra.mxu0 0.0
  %264 = vmatprep.subr.mxu0 0.0
  %265 = vmatpush1.msra.mxu0 0.0
  %266 = vmatprep.subr.mxu0 0.0
  %267 = vmatpush1.msra.mxu0 0.0
  %268 = vmatprep.subr.mxu0 0.0
  %269 = vmatpush1.msra.mxu0 0.0
  %270 = vmatprep.subr.mxu0 0.0
  %271 = vmatpush1.msra.mxu0 0.0
  %272 = vmatprep.subr.mxu0 0.0
  %273 = vmatpush1.msra.mxu0 0.0
  %274 = vmatprep.subr.mxu0 0.0
  %275 = vmatpush1.msra.mxu0 0.0
  %276 = vmatprep.subr.mxu0 0.0
  %277 = vmatpush1.msra.mxu0 0.0
  %278 = vmatprep.subr.mxu0 0.0
  %279 = vmatpush1.msra.mxu0 0.0
  %280 = vmatprep.subr.mxu0 0.0
  %281 = vmatpush1.msra.mxu0 0.0
  %282 = vmatprep.subr.mxu0 0.0
  %283 = vmatpush1.msra.mxu0 0.0
  %284 = vmatprep.subr.mxu0 0.0
  %285 = vmatpush1.msra.mxu0 0.0
  %286 = vmatprep.subr.mxu0 0.0
  %287 = vmatpush1.msra.mxu0 0.0
  %288 = vmatprep.mubr.f32.mxu0 0.0
  %289 = vmatmul.mubr.f32.gmra.mrb[0].mxu0 %v213
  %v290 = vpop.f32.mrb[0].mxu0
  %v291 = vadd.f32 0.0, %v290
  %v292 = vpop.f32.mrb[0].mxu0
  %293 = vmatprep.mubr.f32.mxu0 0.0
  %294 = vmatmul.mubr.f32.gmra.mrb[0].mxu0 %v216
  %v295 = vpop.f32.mrb[0].mxu0
  %v296 = vadd.f32 0.0, %v295
  %v297 = vpop.f32.mrb[0].mxu0
  %298 = vmatprep.mubr.f32.mxu0 0.0
  %299 = vmatmul.mubr.f32.gmra.mrb[0].mxu0 %v219
  %v300 = vpop.f32.mrb[0].mxu0
  %v301 = vadd.f32 0.0, %v300
  %v302 = vpop.f32.mrb[0].mxu0
  %303 = vmatprep.mubr.f32.mxu0 0.0
  %304 = vmatmul.mubr.f32.gmra.mrb[0].mxu0 %v222
  %v305 = vpop.f32.mrb[0].mxu0
  %v306 = vadd.f32 0.0, %v305
  %v307 = vpop.f32.mrb[0].mxu0
  %308 = vdwg.mxu0
  %vm311 = vcmask 1040384
  %v312 = vrot.slane %v110, 7
  %v313 = vrot.slane %v115, 7
  %v314 = vsel %vm311, %v312, %v313
  %v317 = vsel %vm311, 0.0, %v312
  %v320 = vrot.slane %v195, 7
  %v321 = vrot.slane %v200, 7
  %v322 = vsel %vm311, %v320, %v321
  %v325 = vsel %vm311, 0.0, %v320
  %v326 = vld [vmem:[%s8] sm:$0xff]
  %v327 = vld [vmem:[%s8 + $0x8] sm:$0xff]
  %s328 = scalar_lea.vmem %s8, 16
  %v329 = vld [vmem:[%s328] sm:$0xff]
  %v330 = vld [vmem:[%s328 + $0x8] sm:$0xff]
  %vm331 = vcmask 64512
  %v332 = vsel %vm331, %v291, 0.0
  %333 = vadd.xlane.f32.xlu0 %v332
  %v334 = vpop.xlane.xlu0 %333
  %v335 = vsel %vm331, %v296, 0.0
  %336 = vadd.xlane.f32.xlu0 %v335
  %v337 = vpop.xlane.xlu0 %336
  %v338 = vmul.f32 %v291, %v317
  %v339 = vmul.f32 %v296, %v314
  %v340 = vsel %vm331, %v338, 0.0
  %341 = vadd.xlane.f32.xlu0 %v340
  %v342 = vpop.xlane.xlu0 %341
  %v343 = vsel %vm331, %v339, 0.0
  %344 = vadd.xlane.f32.xlu0 %v343
  %v345 = vpop.xlane.xlu0 %344
  %v346 = vmul.f32 %v326, %v334
  %v347 = vmul.f32 %v327, %v337
  %v348 = vadd.f32 %v342, %v346
  %v349 = vadd.f32 %v345, %v347
  %v350 = vld [vmem:[%s7] sm:$0xff]
  %v351 = vld [vmem:[%s7 + $0x8] sm:$0xff]
  %v352 = vadd.f32 %v348, %v350
  %v353 = vadd.f32 %v349, %v351
  %v354 = vmul.f32 %v291, %v110
  %v355 = vmul.f32 %v296, %v115
  %v356 = vsel %vm331, %v354, 0.0
  %357 = vadd.xlane.f32.xlu0 %v356
  %v358 = vpop.xlane.xlu0 %357
  %v359 = vsel %vm331, %v355, 0.0
  %360 = vadd.xlane.f32.xlu0 %v359
  %v361 = vpop.xlane.xlu0 %360
  %v362 = vmul.f32 %v329, %v334
  %v363 = vmul.f32 %v330, %v337
  %v364 = vadd.f32 %v358, %v362
  %v365 = vadd.f32 %v361, %v363
  %s366 = scalar_lea.vmem %s7, 16
  %v367 = vld [vmem:[%s366] sm:$0xff]
  %v368 = vld [vmem:[%s366 + $0x8] sm:$0xff]
  %v369 = vadd.f32 %v364, %v367
  %v370 = vadd.f32 %v365, %v368
  %v371 = vmax.f32 %v352, %v369
  %v372 = vmax.f32 %v353, %v370
  %v373 = vsub.f32 %v352, %v371
  %v374 = vsub.f32 %v353, %v372
  %v375 = vmul.f32 %v373, 1.442695
  %v376 = vpow.pop %v375
  %v377 = vmul.f32 %v374, 1.442695
  %v378 = vpow.pop %v377
  %v379 = vsub.f32 %v369, %v371
  %v380 = vsub.f32 %v370, %v372
  %v381 = vmul.f32 %v379, 1.442695
  %v382 = vpow.pop %v381
  %v383 = vmul.f32 %v380, 1.442695
  %v384 = vpow.pop %v383
  %v385 = vadd.f32 %v376, %v382
  %v386 = vadd.f32 %v378, %v384
  %v387 = vrcp.pop %v385
  %v388 = vrcp.pop %v386
  %v389 = vmul.f32 %v376, %v387
  %v390 = vmul.f32 %v378, %v388
  %392 = vset.pattern.permute.xlu0 0
  %393 = vperm.xlu0 %392, %v389
  %v394 = vpop.permute.xlu0 %393
  %397 = vset.pattern.permute.xlu0 0
  %398 = vperm.xlu0 %397, %v390
  %v399 = vpop.permute.xlu0 %398
  %v401 = vmul.f32 %v394, %v325
  %v402 = vmul.f32 %v399, %v322
  %v403 = vmul.f32 %v389, %v326
  %v404 = vmul.f32 %v390, %v327
  %v405 = vmul.f32 %v382, %v387
  %v406 = vmul.f32 %v384, %v388
  %408 = vset.pattern.permute.xlu0 0
  %409 = vperm.xlu0 %408, %v405
  %v410 = vpop.permute.xlu0 %409
  %413 = vset.pattern.permute.xlu0 0
  %414 = vperm.xlu0 %413, %v406
  %v415 = vpop.permute.xlu0 %414
  %v417 = vmul.f32 %v410, %v195
  %v418 = vmul.f32 %v415, %v200
  %v419 = vadd.f32 %v401, %v417
  %v420 = vadd.f32 %v402, %v418
  %v421 = vmul.f32 %v405, %v329
  %v422 = vmul.f32 %v406, %v330
  %v423 = vadd.f32 %v403, %v421
  %v424 = vadd.f32 %v404, %v422
  %426 = vset.pattern.permute.xlu0 0
  %427 = vperm.xlu0 %426, %v423
  %v428 = vpop.permute.xlu0 %427
  %431 = vset.pattern.permute.xlu0 0
  %432 = vperm.xlu0 %431, %v424
  %v433 = vpop.permute.xlu0 %432
  %v435 = vadd.f32 %v419, %v428
  %v436 = vadd.f32 %v420, %v433
  %439 = vrot.lane.b32.xlu0 %v291, 120
  %v440 = vpop.permute.xlu0 %439
  %441 = vrot.lane.b32.xlu0 %v296, 120
  %v442 = vpop.permute.xlu0 %441
  %v445 = vsel %vm331, %v440, 0.0
  %446 = vadd.xlane.f32.xlu0 %v445
  %v447 = vpop.xlane.xlu0 %446
  %v448 = vsel %vm331, %v442, 0.0
  %449 = vadd.xlane.f32.xlu0 %v448
  %v450 = vpop.xlane.xlu0 %449
  %453 = vrot.lane.b32.xlu0 %v338, 120
  %v454 = vpop.permute.xlu0 %453
  %455 = vrot.lane.b32.xlu0 %v339, 120
  %v456 = vpop.permute.xlu0 %455
  %v459 = vsel %vm331, %v454, 0.0
  %460 = vadd.xlane.f32.xlu0 %v459
  %v461 = vpop.xlane.xlu0 %460
  %v462 = vsel %vm331, %v456, 0.0
  %463 = vadd.xlane.f32.xlu0 %v462
  %v464 = vpop.xlane.xlu0 %463
  %v465 = vmul.f32 %v326, %v447
  %v466 = vmul.f32 %v327, %v450
  %v467 = vadd.f32 %v461, %v465
  %v468 = vadd.f32 %v464, %v466
  %v469 = vadd.f32 %v467, %v350
  %v470 = vadd.f32 %v468, %v351
  %473 = vrot.lane.b32.xlu0 %v354, 120
  %v474 = vpop.permute.xlu0 %473
  %475 = vrot.lane.b32.xlu0 %v355, 120
  %v476 = vpop.permute.xlu0 %475
  %v479 = vsel %vm331, %v474, 0.0
  %480 = vadd.xlane.f32.xlu0 %v479
  %v481 = vpop.xlane.xlu0 %480
  %v482 = vsel %vm331, %v476, 0.0
  %483 = vadd.xlane.f32.xlu0 %v482
  %v484 = vpop.xlane.xlu0 %483
  %v485 = vmul.f32 %v329, %v447
  %v486 = vmul.f32 %v330, %v450
  %v487 = vadd.f32 %v481, %v485
  %v488 = vadd.f32 %v484, %v486
  %v489 = vadd.f32 %v487, %v367
  %v490 = vadd.f32 %v488, %v368
  %v491 = vmax.f32 %v469, %v489
  %v492 = vmax.f32 %v470, %v490
  %v493 = vsub.f32 %v469, %v491
  %v494 = vsub.f32 %v470, %v492
  %v495 = vmul.f32 %v493, 1.442695
  %v496 = vpow.pop %v495
  %v497 = vmul.f32 %v494, 1.442695
  %v498 = vpow.pop %v497
  %v499 = vsub.f32 %v489, %v491
  %v500 = vsub.f32 %v490, %v492
  %v501 = vmul.f32 %v499, 1.442695
  %v502 = vpow.pop %v501
  %v503 = vmul.f32 %v500, 1.442695
  %v504 = vpow.pop %v503
  %v505 = vadd.f32 %v496, %v502
  %v506 = vadd.f32 %v498, %v504
  %v507 = vrcp.pop %v505
  %v508 = vrcp.pop %v506
  %v509 = vmul.f32 %v496, %v507
  %v510 = vmul.f32 %v498, %v508
  %512 = vset.pattern.permute.xlu0 0
  %513 = vperm.xlu0 %512, %v509
  %v514 = vpop.permute.xlu0 %513
  %517 = vset.pattern.permute.xlu0 0
  %518 = vperm.xlu0 %517, %v510
  %v519 = vpop.permute.xlu0 %518
  %v521 = vmul.f32 %v514, %v325
  %v522 = vmul.f32 %v519, %v322
  %v523 = vmul.f32 %v509, %v326
  %v524 = vmul.f32 %v510, %v327
  %v525 = vmul.f32 %v502, %v507
  %v526 = vmul.f32 %v504, %v508
  %528 = vset.pattern.permute.xlu0 0
  %529 = vperm.xlu0 %528, %v525
  %v530 = vpop.permute.xlu0 %529
  %533 = vset.pattern.permute.xlu0 0
  %534 = vperm.xlu0 %533, %v526
  %v535 = vpop.permute.xlu0 %534
  %v537 = vmul.f32 %v530, %v195
  %v538 = vmul.f32 %v535, %v200
  %v539 = vadd.f32 %v521, %v537
  %v540 = vadd.f32 %v522, %v538
  %v541 = vmul.f32 %v525, %v329
  %v542 = vmul.f32 %v526, %v330
  %v543 = vadd.f32 %v523, %v541
  %v544 = vadd.f32 %v524, %v542
  %546 = vset.pattern.permute.xlu0 0
  %547 = vperm.xlu0 %546, %v543
  %v548 = vpop.permute.xlu0 %547
  %551 = vset.pattern.permute.xlu0 0
  %552 = vperm.xlu0 %551, %v544
  %v553 = vpop.permute.xlu0 %552
  %v555 = vadd.f32 %v539, %v548
  %v556 = vadd.f32 %v540, %v553
  %557 = vrot.lane.b32.xlu0 %v291, 112
  %v558 = vpop.permute.xlu0 %557
  %559 = vrot.lane.b32.xlu0 %v296, 112
  %v560 = vpop.permute.xlu0 %559
  %v563 = vsel %vm331, %v558, 0.0
  %564 = vadd.xlane.f32.xlu0 %v563
  %v565 = vpop.xlane.xlu0 %564
  %v566 = vsel %vm331, %v560, 0.0
  %567 = vadd.xlane.f32.xlu0 %v566
  %v568 = vpop.xlane.xlu0 %567
  %569 = vrot.lane.b32.xlu0 %v338, 112
  %v570 = vpop.permute.xlu0 %569
  %571 = vrot.lane.b32.xlu0 %v339, 112
  %v572 = vpop.permute.xlu0 %571
  %v575 = vsel %vm331, %v570, 0.0
  %576 = vadd.xlane.f32.xlu0 %v575
  %v577 = vpop.xlane.xlu0 %576
  %v578 = vsel %vm331, %v572, 0.0
  %579 = vadd.xlane.f32.xlu0 %v578
  %v580 = vpop.xlane.xlu0 %579
  %v581 = vmul.f32 %v326, %v565
  %v582 = vmul.f32 %v327, %v568
  %v583 = vadd.f32 %v577, %v581
  %v584 = vadd.f32 %v580, %v582
  %v585 = vadd.f32 %v583, %v350
  %v586 = vadd.f32 %v584, %v351
  %587 = vrot.lane.b32.xlu0 %v354, 112
  %v588 = vpop.permute.xlu0 %587
  %589 = vrot.lane.b32.xlu0 %v355, 112
  %v590 = vpop.permute.xlu0 %589
  %v593 = vsel %vm331, %v588, 0.0
  %594 = vadd.xlane.f32.xlu0 %v593
  %v595 = vpop.xlane.xlu0 %594
  %v596 = vsel %vm331, %v590, 0.0
  %597 = vadd.xlane.f32.xlu0 %v596
  %v598 = vpop.xlane.xlu0 %597
  %v599 = vmul.f32 %v329, %v565
  %v600 = vmul.f32 %v330, %v568
  %v601 = vadd.f32 %v595, %v599
  %v602 = vadd.f32 %v598, %v600
  %v603 = vadd.f32 %v601, %v367
  %v604 = vadd.f32 %v602, %v368
  %v605 = vmax.f32 %v585, %v603
  %v606 = vmax.f32 %v586, %v604
  %v607 = vsub.f32 %v585, %v605
  %v608 = vsub.f32 %v586, %v606
  %v609 = vmul.f32 %v607, 1.442695
  %v610 = vpow.pop %v609
  %v611 = vmul.f32 %v608, 1.442695
  %v612 = vpow.pop %v611
  %v613 = vsub.f32 %v603, %v605
  %v614 = vsub.f32 %v604, %v606
  %v615 = vmul.f32 %v613, 1.442695
  %v616 = vpow.pop %v615
  %v617 = vmul.f32 %v614, 1.442695
  %v618 = vpow.pop %v617
  %v619 = vadd.f32 %v610, %v616
  %v620 = vadd.f32 %v612, %v618
  %v621 = vrcp.pop %v619
  %v622 = vrcp.pop %v620
  %v623 = vmul.f32 %v610, %v621
  %v624 = vmul.f32 %v612, %v622
  %626 = vset.pattern.permute.xlu0 0
  %627 = vperm.xlu0 %626, %v623
  %v628 = vpop.permute.xlu0 %627
  %631 = vset.pattern.permute.xlu0 0
  %632 = vperm.xlu0 %631, %v624
  %v633 = vpop.permute.xlu0 %632
  %v635 = vmul.f32 %v628, %v325
  %v636 = vmul.f32 %v633, %v322
  %v637 = vmul.f32 %v623, %v326
  %v638 = vmul.f32 %v624, %v327
  %v639 = vmul.f32 %v616, %v621
  %v640 = vmul.f32 %v618, %v622
  %642 = vset.pattern.permute.xlu0 0
  %643 = vperm.xlu0 %642, %v639
  %v644 = vpop.permute.xlu0 %643
  %647 = vset.pattern.permute.xlu0 0
  %648 = vperm.xlu0 %647, %v640
  %v649 = vpop.permute.xlu0 %648
  %v651 = vmul.f32 %v644, %v195
  %v652 = vmul.f32 %v649, %v200
  %v653 = vadd.f32 %v635, %v651
  %v654 = vadd.f32 %v636, %v652
  %v655 = vmul.f32 %v639, %v329
  %v656 = vmul.f32 %v640, %v330
  %v657 = vadd.f32 %v637, %v655
  %v658 = vadd.f32 %v638, %v656
  %660 = vset.pattern.permute.xlu0 0
  %661 = vperm.xlu0 %660, %v657
  %v662 = vpop.permute.xlu0 %661
  %665 = vset.pattern.permute.xlu0 0
  %666 = vperm.xlu0 %665, %v658
  %v667 = vpop.permute.xlu0 %666
  %v669 = vadd.f32 %v653, %v662
  %v670 = vadd.f32 %v654, %v667
  %671 = vrot.lane.b32.xlu0 %v291, 104
  %v672 = vpop.permute.xlu0 %671
  %673 = vrot.lane.b32.xlu0 %v296, 104
  %v674 = vpop.permute.xlu0 %673
  %v677 = vsel %vm331, %v672, 0.0
  %678 = vadd.xlane.f32.xlu0 %v677
  %v679 = vpop.xlane.xlu0 %678
  %v680 = vsel %vm331, %v674, 0.0
  %681 = vadd.xlane.f32.xlu0 %v680
  %v682 = vpop.xlane.xlu0 %681
  %683 = vrot.lane.b32.xlu0 %v338, 104
  %v684 = vpop.permute.xlu0 %683
  %685 = vrot.lane.b32.xlu0 %v339, 104
  %v686 = vpop.permute.xlu0 %685
  %v689 = vsel %vm331, %v684, 0.0
  %690 = vadd.xlane.f32.xlu0 %v689
  %v691 = vpop.xlane.xlu0 %690
  %v692 = vsel %vm331, %v686, 0.0
  %693 = vadd.xlane.f32.xlu0 %v692
  %v694 = vpop.xlane.xlu0 %693
  %v695 = vmul.f32 %v326, %v679
  %v696 = vmul.f32 %v327, %v682
  %v697 = vadd.f32 %v691, %v695
  %v698 = vadd.f32 %v694, %v696
  %v699 = vadd.f32 %v697, %v350
  %v700 = vadd.f32 %v698, %v351
  %701 = vrot.lane.b32.xlu0 %v354, 104
  %v702 = vpop.permute.xlu0 %701
  %703 = vrot.lane.b32.xlu0 %v355, 104
  %v704 = vpop.permute.xlu0 %703
  %v707 = vsel %vm331, %v702, 0.0
  %708 = vadd.xlane.f32.xlu0 %v707
  %v709 = vpop.xlane.xlu0 %708
  %v710 = vsel %vm331, %v704, 0.0
  %711 = vadd.xlane.f32.xlu0 %v710
  %v712 = vpop.xlane.xlu0 %711
  %v713 = vmul.f32 %v329, %v679
  %v714 = vmul.f32 %v330, %v682
  %v715 = vadd.f32 %v709, %v713
  %v716 = vadd.f32 %v712, %v714
  %v717 = vadd.f32 %v715, %v367
  %v718 = vadd.f32 %v716, %v368
  %v719 = vmax.f32 %v699, %v717
  %v720 = vmax.f32 %v700, %v718
  %v721 = vsub.f32 %v699, %v719
  %v722 = vsub.f32 %v700, %v720
  %v723 = vmul.f32 %v721, 1.442695
  %v724 = vpow.pop %v723
  %v725 = vmul.f32 %v722, 1.442695
  %v726 = vpow.pop %v725
  %v727 = vsub.f32 %v717, %v719
  %v728 = vsub.f32 %v718, %v720
  %v729 = vmul.f32 %v727, 1.442695
  %v730 = vpow.pop %v729
  %v731 = vmul.f32 %v728, 1.442695
  %v732 = vpow.pop %v731
  %v733 = vadd.f32 %v724, %v730
  %v734 = vadd.f32 %v726, %v732
  %v735 = vrcp.pop %v733
  %v736 = vrcp.pop %v734
  %v737 = vmul.f32 %v724, %v735
  %v738 = vmul.f32 %v726, %v736
  %740 = vset.pattern.permute.xlu0 0
  %741 = vperm.xlu0 %740, %v737
  %v742 = vpop.permute.xlu0 %741
  %745 = vset.pattern.permute.xlu0 0
  %746 = vperm.xlu0 %745, %v738
  %v747 = vpop.permute.xlu0 %746
  %v749 = vmul.f32 %v742, %v325
  %v750 = vmul.f32 %v747, %v322
  %v751 = vmul.f32 %v737, %v326
  %v752 = vmul.f32 %v738, %v327
  %v753 = vmul.f32 %v730, %v735
  %v754 = vmul.f32 %v732, %v736
  %756 = vset.pattern.permute.xlu0 0
  %757 = vperm.xlu0 %756, %v753
  %v758 = vpop.permute.xlu0 %757
  %761 = vset.pattern.permute.xlu0 0
  %762 = vperm.xlu0 %761, %v754
  %v763 = vpop.permute.xlu0 %762
  %v765 = vmul.f32 %v758, %v195
  %v766 = vmul.f32 %v763, %v200
  %v767 = vadd.f32 %v749, %v765
  %v768 = vadd.f32 %v750, %v766
  %v769 = vmul.f32 %v753, %v329
  %v770 = vmul.f32 %v754, %v330
  %v771 = vadd.f32 %v751, %v769
  %v772 = vadd.f32 %v752, %v770
  %774 = vset.pattern.permute.xlu0 0
  %775 = vperm.xlu0 %774, %v771
  %v776 = vpop.permute.xlu0 %775
  %779 = vset.pattern.permute.xlu0 0
  %780 = vperm.xlu0 %779, %v772
  %v781 = vpop.permute.xlu0 %780
  %v783 = vadd.f32 %v767, %v776
  %v784 = vadd.f32 %v768, %v781
  %v785 = vsel %vm331, %v435, %v555
  %v786 = vsel %vm331, %v436, %v556
  %v787 = vsel %vm36, %v785, %v669
  %v788 = vsel %vm36, %v786, %v670
  %vm789 = vcmask 195584
  %v790 = vsel %vm789, %v787, %v783
  %v791 = vsel %vm789, %v788, %v784
  %v792 = vsel %vm331, %v301, 0.0
  %793 = vadd.xlane.f32.xlu0 %v792
  %v794 = vpop.xlane.xlu0 %793
  %v795 = vsel %vm331, %v306, 0.0
  %796 = vadd.xlane.f32.xlu0 %v795
  %v797 = vpop.xlane.xlu0 %796
  %v798 = vmul.f32 %v301, %v317
  %v799 = vmul.f32 %v306, %v314
  %v800 = vsel %vm331, %v798, 0.0
  %801 = vadd.xlane.f32.xlu0 %v800
  %v802 = vpop.xlane.xlu0 %801
  %v803 = vsel %vm331, %v799, 0.0
  %804 = vadd.xlane.f32.xlu0 %v803
  %v805 = vpop.xlane.xlu0 %804
  %v806 = vmul.f32 %v326, %v794
  %v807 = vmul.f32 %v327, %v797
  %v808 = vadd.f32 %v802, %v806
  %v809 = vadd.f32 %v805, %v807
  %s810 = scalar_lea.vmem %s7, 32
  %v811 = vld [vmem:[%s810] sm:$0xff]
  %v812 = vld [vmem:[%s810 + $0x8] sm:$0xff]
  %v813 = vadd.f32 %v808, %v811
  %v814 = vadd.f32 %v809, %v812
  %v815 = vmul.f32 %v301, %v110
  %v816 = vmul.f32 %v306, %v115
  %v817 = vsel %vm331, %v815, 0.0
  %818 = vadd.xlane.f32.xlu0 %v817
  %v819 = vpop.xlane.xlu0 %818
  %v820 = vsel %vm331, %v816, 0.0
  %821 = vadd.xlane.f32.xlu0 %v820
  %v822 = vpop.xlane.xlu0 %821
  %v823 = vmul.f32 %v329, %v794
  %v824 = vmul.f32 %v330, %v797
  %v825 = vadd.f32 %v819, %v823
  %v826 = vadd.f32 %v822, %v824
  %s827 = scalar_lea.vmem %s7, 48
  %v828 = vld [vmem:[%s827] sm:$0xff]
  %v829 = vld [vmem:[%s827 + $0x8] sm:$0xff]
  %v830 = vadd.f32 %v825, %v828
  %v831 = vadd.f32 %v826, %v829
  %v832 = vmax.f32 %v813, %v830
  %v833 = vmax.f32 %v814, %v831
  %v834 = vsub.f32 %v813, %v832
  %v835 = vsub.f32 %v814, %v833
  %v836 = vmul.f32 %v834, 1.442695
  %v837 = vpow.pop %v836
  %v838 = vmul.f32 %v835, 1.442695
  %v839 = vpow.pop %v838
  %v840 = vsub.f32 %v830, %v832
  %v841 = vsub.f32 %v831, %v833
  %v842 = vmul.f32 %v840, 1.442695
  %v843 = vpow.pop %v842
  %v844 = vmul.f32 %v841, 1.442695
  %v845 = vpow.pop %v844
  %v846 = vadd.f32 %v837, %v843
  %v847 = vadd.f32 %v839, %v845
  %v848 = vrcp.pop %v846
  %v849 = vrcp.pop %v847
  %v850 = vmul.f32 %v837, %v848
  %v851 = vmul.f32 %v839, %v849
  %853 = vset.pattern.permute.xlu0 0
  %854 = vperm.xlu0 %853, %v850
  %v855 = vpop.permute.xlu0 %854
  %858 = vset.pattern.permute.xlu0 0
  %859 = vperm.xlu0 %858, %v851
  %v860 = vpop.permute.xlu0 %859
  %v862 = vmul.f32 %v855, %v325
  %v863 = vmul.f32 %v860, %v322
  %v864 = vmul.f32 %v850, %v326
  %v865 = vmul.f32 %v851, %v327
  %v866 = vmul.f32 %v843, %v848
  %v867 = vmul.f32 %v845, %v849
  %869 = vset.pattern.permute.xlu0 0
  %870 = vperm.xlu0 %869, %v866
  %v871 = vpop.permute.xlu0 %870
  %874 = vset.pattern.permute.xlu0 0
  %875 = vperm.xlu0 %874, %v867
  %v876 = vpop.permute.xlu0 %875
  %v878 = vmul.f32 %v871, %v195
  %v879 = vmul.f32 %v876, %v200
  %v880 = vadd.f32 %v862, %v878
  %v881 = vadd.f32 %v863, %v879
  %v882 = vmul.f32 %v866, %v329
  %v883 = vmul.f32 %v867, %v330
  %v884 = vadd.f32 %v864, %v882
  %v885 = vadd.f32 %v865, %v883
  %887 = vset.pattern.permute.xlu0 0
  %888 = vperm.xlu0 %887, %v884
  %v889 = vpop.permute.xlu0 %888
  %892 = vset.pattern.permute.xlu0 0
  %893 = vperm.xlu0 %892, %v885
  %v894 = vpop.permute.xlu0 %893
  %v896 = vadd.f32 %v880, %v889
  %v897 = vadd.f32 %v881, %v894
  %900 = vrot.lane.b32.xlu0 %v301, 120
  %v901 = vpop.permute.xlu0 %900
  %902 = vrot.lane.b32.xlu0 %v306, 120
  %v903 = vpop.permute.xlu0 %902
  %v906 = vsel %vm331, %v901, 0.0
  %907 = vadd.xlane.f32.xlu0 %v906
  %v908 = vpop.xlane.xlu0 %907
  %v909 = vsel %vm331, %v903, 0.0
  %910 = vadd.xlane.f32.xlu0 %v909
  %v911 = vpop.xlane.xlu0 %910
  %914 = vrot.lane.b32.xlu0 %v798, 120
  %v915 = vpop.permute.xlu0 %914
  %916 = vrot.lane.b32.xlu0 %v799, 120
  %v917 = vpop.permute.xlu0 %916
  %v920 = vsel %vm331, %v915, 0.0
  %921 = vadd.xlane.f32.xlu0 %v920
  %v922 = vpop.xlane.xlu0 %921
  %v923 = vsel %vm331, %v917, 0.0
  %924 = vadd.xlane.f32.xlu0 %v923
  %v925 = vpop.xlane.xlu0 %924
  %v926 = vmul.f32 %v326, %v908
  %v927 = vmul.f32 %v327, %v911
  %v928 = vadd.f32 %v922, %v926
  %v929 = vadd.f32 %v925, %v927
  %v930 = vadd.f32 %v928, %v811
  %v931 = vadd.f32 %v929, %v812
  %934 = vrot.lane.b32.xlu0 %v815, 120
  %v935 = vpop.permute.xlu0 %934
  %936 = vrot.lane.b32.xlu0 %v816, 120
  %v937 = vpop.permute.xlu0 %936
  %v940 = vsel %vm331, %v935, 0.0
  %941 = vadd.xlane.f32.xlu0 %v940
  %v942 = vpop.xlane.xlu0 %941
  %v943 = vsel %vm331, %v937, 0.0
  %944 = vadd.xlane.f32.xlu0 %v943
  %v945 = vpop.xlane.xlu0 %944
  %v946 = vmul.f32 %v329, %v908
  %v947 = vmul.f32 %v330, %v911
  %v948 = vadd.f32 %v942, %v946
  %v949 = vadd.f32 %v945, %v947
  %v950 = vadd.f32 %v948, %v828
  %v951 = vadd.f32 %v949, %v829
  %v952 = vmax.f32 %v930, %v950
  %v953 = vmax.f32 %v931, %v951
  %v954 = vsub.f32 %v930, %v952
  %v955 = vsub.f32 %v931, %v953
  %v956 = vmul.f32 %v954, 1.442695
  %v957 = vpow.pop %v956
  %v958 = vmul.f32 %v955, 1.442695
  %v959 = vpow.pop %v958
  %v960 = vsub.f32 %v950, %v952
  %v961 = vsub.f32 %v951, %v953
  %v962 = vmul.f32 %v960, 1.442695
  %v963 = vpow.pop %v962
  %v964 = vmul.f32 %v961, 1.442695
  %v965 = vpow.pop %v964
  %v966 = vadd.f32 %v957, %v963
  %v967 = vadd.f32 %v959, %v965
  %v968 = vrcp.pop %v966
  %v969 = vrcp.pop %v967
  %v970 = vmul.f32 %v957, %v968
  %v971 = vmul.f32 %v959, %v969
  %973 = vset.pattern.permute.xlu0 0
  %974 = vperm.xlu0 %973, %v970
  %v975 = vpop.permute.xlu0 %974
  %978 = vset.pattern.permute.xlu0 0
  %979 = vperm.xlu0 %978, %v971
  %v980 = vpop.permute.xlu0 %979
  %v982 = vmul.f32 %v975, %v325
  %v983 = vmul.f32 %v980, %v322
  %v984 = vmul.f32 %v970, %v326
  %v985 = vmul.f32 %v971, %v327
  %v986 = vmul.f32 %v963, %v968
  %v987 = vmul.f32 %v965, %v969
  %989 = vset.pattern.permute.xlu0 0
  %990 = vperm.xlu0 %989, %v986
  %v991 = vpop.permute.xlu0 %990
  %994 = vset.pattern.permute.xlu0 0
  %995 = vperm.xlu0 %994, %v987
  %v996 = vpop.permute.xlu0 %995
  %v998 = vmul.f32 %v991, %v195
  %v999 = vmul.f32 %v996, %v200
  %v1000 = vadd.f32 %v982, %v998
  %v1001 = vadd.f32 %v983, %v999
  %v1002 = vmul.f32 %v986, %v329
  %v1003 = vmul.f32 %v987, %v330
  %v1004 = vadd.f32 %v984, %v1002
  %v1005 = vadd.f32 %v985, %v1003
  %1007 = vset.pattern.permute.xlu0 0
  %1008 = vperm.xlu0 %1007, %v1004
  %v1009 = vpop.permute.xlu0 %1008
  %1012 = vset.pattern.permute.xlu0 0
  %1013 = vperm.xlu0 %1012, %v1005
  %v1014 = vpop.permute.xlu0 %1013
  %v1016 = vadd.f32 %v1000, %v1009
  %v1017 = vadd.f32 %v1001, %v1014
  %1018 = vrot.lane.b32.xlu0 %v301, 112
  %v1019 = vpop.permute.xlu0 %1018
  %1020 = vrot.lane.b32.xlu0 %v306, 112
  %v1021 = vpop.permute.xlu0 %1020
  %v1024 = vsel %vm331, %v1019, 0.0
  %1025 = vadd.xlane.f32.xlu0 %v1024
  %v1026 = vpop.xlane.xlu0 %1025
  %v1027 = vsel %vm331, %v1021, 0.0
  %1028 = vadd.xlane.f32.xlu0 %v1027
  %v1029 = vpop.xlane.xlu0 %1028
  %1030 = vrot.lane.b32.xlu0 %v798, 112
  %v1031 = vpop.permute.xlu0 %1030
  %1032 = vrot.lane.b32.xlu0 %v799, 112
  %v1033 = vpop.permute.xlu0 %1032
  %v1036 = vsel %vm331, %v1031, 0.0
  %1037 = vadd.xlane.f32.xlu0 %v1036
  %v1038 = vpop.xlane.xlu0 %1037
  %v1039 = vsel %vm331, %v1033, 0.0
  %1040 = vadd.xlane.f32.xlu0 %v1039
  %v1041 = vpop.xlane.xlu0 %1040
  %v1042 = vmul.f32 %v326, %v1026
  %v1043 = vmul.f32 %v327, %v1029
  %v1044 = vadd.f32 %v1038, %v1042
  %v1045 = vadd.f32 %v1041, %v1043
  %v1046 = vadd.f32 %v1044, %v811
  %v1047 = vadd.f32 %v1045, %v812
  %1048 = vrot.lane.b32.xlu0 %v815, 112
  %v1049 = vpop.permute.xlu0 %1048
  %1050 = vrot.lane.b32.xlu0 %v816, 112
  %v1051 = vpop.permute.xlu0 %1050
  %v1054 = vsel %vm331, %v1049, 0.0
  %1055 = vadd.xlane.f32.xlu0 %v1054
  %v1056 = vpop.xlane.xlu0 %1055
  %v1057 = vsel %vm331, %v1051, 0.0
  %1058 = vadd.xlane.f32.xlu0 %v1057
  %v1059 = vpop.xlane.xlu0 %1058
  %v1060 = vmul.f32 %v329, %v1026
  %v1061 = vmul.f32 %v330, %v1029
  %v1062 = vadd.f32 %v1056, %v1060
  %v1063 = vadd.f32 %v1059, %v1061
  %v1064 = vadd.f32 %v1062, %v828
  %v1065 = vadd.f32 %v1063, %v829
  %v1066 = vmax.f32 %v1046, %v1064
  %v1067 = vmax.f32 %v1047, %v1065
  %v1068 = vsub.f32 %v1046, %v1066
  %v1069 = vsub.f32 %v1047, %v1067
  %v1070 = vmul.f32 %v1068, 1.442695
  %v1071 = vpow.pop %v1070
  %v1072 = vmul.f32 %v1069, 1.442695
  %v1073 = vpow.pop %v1072
  %v1074 = vsub.f32 %v1064, %v1066
  %v1075 = vsub.f32 %v1065, %v1067
  %v1076 = vmul.f32 %v1074, 1.442695
  %v1077 = vpow.pop %v1076
  %v1078 = vmul.f32 %v1075, 1.442695
  %v1079 = vpow.pop %v1078
  %v1080 = vadd.f32 %v1071, %v1077
  %v1081 = vadd.f32 %v1073, %v1079
  %v1082 = vrcp.pop %v1080
  %v1083 = vrcp.pop %v1081
  %v1084 = vmul.f32 %v1071, %v1082
  %v1085 = vmul.f32 %v1073, %v1083
  %1087 = vset.pattern.permute.xlu0 0
  %1088 = vperm.xlu0 %1087, %v1084
  %v1089 = vpop.permute.xlu0 %1088
  %1092 = vset.pattern.permute.xlu0 0
  %1093 = vperm.xlu0 %1092, %v1085
  %v1094 = vpop.permute.xlu0 %1093
  %v1096 = vmul.f32 %v1089, %v325
  %v1097 = vmul.f32 %v1094, %v322
  %v1098 = vmul.f32 %v1084, %v326
  %v1099 = vmul.f32 %v1085, %v327
  %v1100 = vmul.f32 %v1077, %v1082
  %v1101 = vmul.f32 %v1079, %v1083
  %1103 = vset.pattern.permute.xlu0 0
  %1104 = vperm.xlu0 %1103, %v1100
  %v1105 = vpop.permute.xlu0 %1104
  %1108 = vset.pattern.permute.xlu0 0
  %1109 = vperm.xlu0 %1108, %v1101
  %v1110 = vpop.permute.xlu0 %1109
  %v1112 = vmul.f32 %v1105, %v195
  %v1113 = vmul.f32 %v1110, %v200
  %v1114 = vadd.f32 %v1096, %v1112
  %v1115 = vadd.f32 %v1097, %v1113
  %v1116 = vmul.f32 %v1100, %v329
  %v1117 = vmul.f32 %v1101, %v330
  %v1118 = vadd.f32 %v1098, %v1116
  %v1119 = vadd.f32 %v1099, %v1117
  %1121 = vset.pattern.permute.xlu0 0
  %1122 = vperm.xlu0 %1121, %v1118
  %v1123 = vpop.permute.xlu0 %1122
  %1126 = vset.pattern.permute.xlu0 0
  %1127 = vperm.xlu0 %1126, %v1119
  %v1128 = vpop.permute.xlu0 %1127
  %v1130 = vadd.f32 %v1114, %v1123
  %v1131 = vadd.f32 %v1115, %v1128
  %1132 = vrot.lane.b32.xlu0 %v301, 104
  %v1133 = vpop.permute.xlu0 %1132
  %1134 = vrot.lane.b32.xlu0 %v306, 104
  %v1135 = vpop.permute.xlu0 %1134
  %v1138 = vsel %vm331, %v1133, 0.0
  %1139 = vadd.xlane.f32.xlu0 %v1138
  %v1140 = vpop.xlane.xlu0 %1139
  %v1141 = vsel %vm331, %v1135, 0.0
  %1142 = vadd.xlane.f32.xlu0 %v1141
  %v1143 = vpop.xlane.xlu0 %1142
  %1144 = vrot.lane.b32.xlu0 %v798, 104
  %v1145 = vpop.permute.xlu0 %1144
  %1146 = vrot.lane.b32.xlu0 %v799, 104
  %v1147 = vpop.permute.xlu0 %1146
  %v1150 = vsel %vm331, %v1145, 0.0
  %1151 = vadd.xlane.f32.xlu0 %v1150
  %v1152 = vpop.xlane.xlu0 %1151
  %v1153 = vsel %vm331, %v1147, 0.0
  %1154 = vadd.xlane.f32.xlu0 %v1153
  %v1155 = vpop.xlane.xlu0 %1154
  %v1156 = vmul.f32 %v326, %v1140
  %v1157 = vmul.f32 %v327, %v1143
  %v1158 = vadd.f32 %v1152, %v1156
  %v1159 = vadd.f32 %v1155, %v1157
  %v1160 = vadd.f32 %v1158, %v811
  %v1161 = vadd.f32 %v1159, %v812
  %1162 = vrot.lane.b32.xlu0 %v815, 104
  %v1163 = vpop.permute.xlu0 %1162
  %1164 = vrot.lane.b32.xlu0 %v816, 104
  %v1165 = vpop.permute.xlu0 %1164
  %v1168 = vsel %vm331, %v1163, 0.0
  %1169 = vadd.xlane.f32.xlu0 %v1168
  %v1170 = vpop.xlane.xlu0 %1169
  %v1171 = vsel %vm331, %v1165, 0.0
  %1172 = vadd.xlane.f32.xlu0 %v1171
  %v1173 = vpop.xlane.xlu0 %1172
  %v1174 = vmul.f32 %v329, %v1140
  %v1175 = vmul.f32 %v330, %v1143
  %v1176 = vadd.f32 %v1170, %v1174
  %v1177 = vadd.f32 %v1173, %v1175
  %v1178 = vadd.f32 %v1176, %v828
  %v1179 = vadd.f32 %v1177, %v829
  %v1180 = vmax.f32 %v1160, %v1178
  %v1181 = vmax.f32 %v1161, %v1179
  %v1182 = vsub.f32 %v1160, %v1180
  %v1183 = vsub.f32 %v1161, %v1181
  %v1184 = vmul.f32 %v1182, 1.442695
  %v1185 = vpow.pop %v1184
  %v1186 = vmul.f32 %v1183, 1.442695
  %v1187 = vpow.pop %v1186
  %v1188 = vsub.f32 %v1178, %v1180
  %v1189 = vsub.f32 %v1179, %v1181
  %v1190 = vmul.f32 %v1188, 1.442695
  %v1191 = vpow.pop %v1190
  %v1192 = vmul.f32 %v1189, 1.442695
  %v1193 = vpow.pop %v1192
  %v1194 = vadd.f32 %v1185, %v1191
  %v1195 = vadd.f32 %v1187, %v1193
  %v1196 = vrcp.pop %v1194
  %v1197 = vrcp.pop %v1195
  %v1198 = vmul.f32 %v1185, %v1196
  %v1199 = vmul.f32 %v1187, %v1197
  %1201 = vset.pattern.permute.xlu0 0
  %1202 = vperm.xlu0 %1201, %v1198
  %v1203 = vpop.permute.xlu0 %1202
  %1206 = vset.pattern.permute.xlu0 0
  %1207 = vperm.xlu0 %1206, %v1199
  %v1208 = vpop.permute.xlu0 %1207
  %v1210 = vmul.f32 %v1203, %v325
  %v1211 = vmul.f32 %v1208, %v322
  %v1212 = vmul.f32 %v1198, %v326
  %v1213 = vmul.f32 %v1199, %v327
  %v1214 = vmul.f32 %v1191, %v1196
  %v1215 = vmul.f32 %v1193, %v1197
  %1217 = vset.pattern.permute.xlu0 0
  %1218 = vperm.xlu0 %1217, %v1214
  %v1219 = vpop.permute.xlu0 %1218
  %1222 = vset.pattern.permute.xlu0 0
  %1223 = vperm.xlu0 %1222, %v1215
  %v1224 = vpop.permute.xlu0 %1223
  %v1226 = vmul.f32 %v1219, %v195
  %v1227 = vmul.f32 %v1224, %v200
  %v1228 = vadd.f32 %v1210, %v1226
  %v1229 = vadd.f32 %v1211, %v1227
  %v1230 = vmul.f32 %v1214, %v329
  %v1231 = vmul.f32 %v1215, %v330
  %v1232 = vadd.f32 %v1212, %v1230
  %v1233 = vadd.f32 %v1213, %v1231
  %1235 = vset.pattern.permute.xlu0 0
  %1236 = vperm.xlu0 %1235, %v1232
  %v1237 = vpop.permute.xlu0 %1236
  %1240 = vset.pattern.permute.xlu0 0
  %1241 = vperm.xlu0 %1240, %v1233
  %v1242 = vpop.permute.xlu0 %1241
  %v1244 = vadd.f32 %v1228, %v1237
  %v1245 = vadd.f32 %v1229, %v1242
  %v1246 = vsel %vm331, %v896, %v1016
  %v1247 = vsel %vm331, %v897, %v1017
  %v1248 = vsel %vm36, %v1246, %v1130
  %v1249 = vsel %vm36, %v1247, %v1131
  %v1250 = vsel %vm789, %v1248, %v1244
  %v1251 = vsel %vm789, %v1249, %v1245
  %v1252 = vld [vmem:[%s6] sm:$0xff]
  %v1253 = vld [vmem:[%s6 + $0x8] sm:$0xff]
  %v1254 = vld [vmem:[%s6 + $0x10] sm:$0xff]
  %v1255 = vld [vmem:[%s6 + $0x18] sm:$0xff]
  %v1257 = vsel %vm211, %v790, 0
  %v1260 = vsel %vm211, %v791, 0
  %v1263 = vsel %vm211, %v1250, 0
  %v1266 = vsel %vm211, %v1251, 0
  %1268 = vmatprep.subr.mxu0 0.0
  %1269 = vmatpush1.msra.mxu0 %v1252
  %1270 = vmatprep.subr.mxu0 0.0
  %1271 = vmatpush1.msra.mxu0 %v1253
  %1272 = vmatprep.subr.mxu0 0.0
  %1273 = vmatpush1.msra.mxu0 %v1254
  %1274 = vmatprep.subr.mxu0 0.0
  %1275 = vmatpush1.msra.mxu0 %v1255
  %1276 = vmatprep.subr.mxu0 0.0
  %1277 = vmatpush1.msra.mxu0 0.0
  %1278 = vmatprep.subr.mxu0 0.0
  %1279 = vmatpush1.msra.mxu0 0.0
  %1280 = vmatprep.subr.mxu0 0.0
  %1281 = vmatpush1.msra.mxu0 0.0
  %1282 = vmatprep.subr.mxu0 0.0
  %1283 = vmatpush1.msra.mxu0 0.0
  %1284 = vmatprep.subr.mxu0 0.0
  %1285 = vmatpush1.msra.mxu0 0.0
  %1286 = vmatprep.subr.mxu0 0.0
  %1287 = vmatpush1.msra.mxu0 0.0
  %1288 = vmatprep.subr.mxu0 0.0
  %1289 = vmatpush1.msra.mxu0 0.0
  %1290 = vmatprep.subr.mxu0 0.0
  %1291 = vmatpush1.msra.mxu0 0.0
  %1292 = vmatprep.subr.mxu0 0.0
  %1293 = vmatpush1.msra.mxu0 0.0
  %1294 = vmatprep.subr.mxu0 0.0
  %1295 = vmatpush1.msra.mxu0 0.0
  %1296 = vmatprep.subr.mxu0 0.0
  %1297 = vmatpush1.msra.mxu0 0.0
  %1298 = vmatprep.subr.mxu0 0.0
  %1299 = vmatpush1.msra.mxu0 0.0
  %1300 = vmatprep.subr.mxu0 0.0
  %1301 = vmatpush1.msra.mxu0 0.0
  %1302 = vmatprep.subr.mxu0 0.0
  %1303 = vmatpush1.msra.mxu0 0.0
  %1304 = vmatprep.subr.mxu0 0.0
  %1305 = vmatpush1.msra.mxu0 0.0
  %1306 = vmatprep.subr.mxu0 0.0
  %1307 = vmatpush1.msra.mxu0 0.0
  %1308 = vmatprep.subr.mxu0 0.0
  %1309 = vmatpush1.msra.mxu0 0.0
  %1310 = vmatprep.subr.mxu0 0.0
  %1311 = vmatpush1.msra.mxu0 0.0
  %1312 = vmatprep.subr.mxu0 0.0
  %1313 = vmatpush1.msra.mxu0 0.0
  %1314 = vmatprep.subr.mxu0 0.0
  %1315 = vmatpush1.msra.mxu0 0.0
  %1316 = vmatprep.subr.mxu0 0.0
  %1317 = vmatpush1.msra.mxu0 0.0
  %1318 = vmatprep.subr.mxu0 0.0
  %1319 = vmatpush1.msra.mxu0 0.0
  %1320 = vmatprep.subr.mxu0 0.0
  %1321 = vmatpush1.msra.mxu0 0.0
  %1322 = vmatprep.subr.mxu0 0.0
  %1323 = vmatpush1.msra.mxu0 0.0
  %1324 = vmatprep.subr.mxu0 0.0
  %1325 = vmatpush1.msra.mxu0 0.0
  %1326 = vmatprep.subr.mxu0 0.0
  %1327 = vmatpush1.msra.mxu0 0.0
  %1328 = vmatprep.subr.mxu0 0.0
  %1329 = vmatpush1.msra.mxu0 0.0
  %1330 = vmatprep.subr.mxu0 0.0
  %1331 = vmatpush1.msra.mxu0 0.0
  %1332 = vmatprep.mubr.f32.mxu0 0.0
  %1333 = vmatmul.mubr.f32.gmra.mrb[0].mxu0 %v1257
  %v1334 = vpop.f32.mrb[0].mxu0
  %v1335 = vadd.f32 0.0, %v1334
  %v1336 = vpop.f32.mrb[0].mxu0
  %1337 = vmatprep.mubr.f32.mxu0 0.0
  %1338 = vmatmul.mubr.f32.gmra.mrb[0].mxu0 %v1260
  %v1339 = vpop.f32.mrb[0].mxu0
  %v1340 = vadd.f32 0.0, %v1339
  %v1341 = vpop.f32.mrb[0].mxu0
  %1342 = vmatprep.mubr.f32.mxu0 0.0
  %1343 = vmatmul.mubr.f32.gmra.mrb[0].mxu0 %v1263
  %v1344 = vpop.f32.mrb[0].mxu0
  %v1345 = vadd.f32 0.0, %v1344
  %v1346 = vpop.f32.mrb[0].mxu0
  %1347 = vmatprep.mubr.f32.mxu0 0.0
  %1348 = vmatmul.mubr.f32.gmra.mrb[0].mxu0 %v1266
  %v1349 = vpop.f32.mrb[0].mxu0
  %v1350 = vadd.f32 0.0, %v1349
  %v1351 = vpop.f32.mrb[0].mxu0
  %1352 = vdwg.mxu0
  %1353 = vst [vmem:[%s9] sm:$0xff] %v1335
  %1354 = vst [vmem:[%s9 + $0x8] sm:$0xff] %v1340
  %1355 = vst [vmem:[%s9 + $0x10] sm:$0xff] %v1345
  %1356 = vst [vmem:[%s9 + $0x18] sm:$0xff] %v1350
  // Predicated region
  $region38: #{sparse_mha_decoder.1} parent=0 // pred_check
    _
  $region39: #{sparse_mha_decoder.1} parent=0 // pred_check_branch
    %1358 = sbr.rel (0) target = $region41
  $region40: #{sparse_mha_decoder.1} parent=0 // pred_region
    _
  $region41: #{sparse_mha_decoder.1} parent=0 // pred_fallthru
    _
  // Predicated region
  $region42: #{sparse_mha_decoder.1} parent=0 // pred_check
    _
  $region43: #{sparse_mha_decoder.1} parent=0 // pred_check_branch
    %1360 = sbr.rel (0) target = $region45
  $region44: #{sparse_mha_decoder.1} parent=0 // pred_region
    _
  $region45: #{sparse_mha_decoder.1} parent=0 // pred_fallthru
    _

</llo_original>
